<compile_context>
chip_gen: v6e
topology: v6e:2x2x1
jax: 0.10.0
libtpu: 0.0.40
codegen_flags: <defaults>
</compile_context>

<pallas_src>
import functools

import jax
import jax.numpy as jnp
from jax.experimental import pallas as pl
from jax.experimental.pallas import tpu as pltpu

_LANE = 128
_SUBLANE = 8


def _round_up(x, m):
    return ((x + m - 1) // m) * m


def _coupling_kernel(n_layers, hp,
                     x_ref, m_ref,
                     w0_ref, b0_ref,
                     wsh_ref, bsh_ref, wth_ref, bth_ref,
                     wsL_ref, bsL_ref, wtL_ref, btL_ref,
                     u_ref, ldj_ref):
    x = x_ref[...].astype(jnp.float32)      # (TB, Dp)
    m = m_ref[...].astype(jnp.float32)      # (TB, 1) per-row mask
    mx = x * m

    # ---- fused layer 0: one matmul produces both nets' first hidden state ----
    h0 = jnp.dot(mx, w0_ref[...], preferred_element_type=jnp.float32) + b0_ref[...]
    hs = h0[:, :hp]                          # s-net pre-activation
    ht = h0[:, hp:]                          # t-net pre-activation

    # ---- hidden layers: s-net uses Tanh, t-net uses ReLU (deepcopy'd Linears) ----
    for k in range(n_layers):                # static unroll
        hs = jnp.dot(jnp.tanh(hs), wsh_ref[k],
                     preferred_element_type=jnp.float32) + bsh_ref[k]
        ht = jnp.dot(jnp.maximum(ht, 0.0), wth_ref[k],
                     preferred_element_type=jnp.float32) + bth_ref[k]

    # ---- final layers ----
    s = jnp.dot(jnp.tanh(hs), wsL_ref[...],
                preferred_element_type=jnp.float32) + bsL_ref[...]
    t = jnp.dot(jnp.maximum(ht, 0.0), wtL_ref[...],
                preferred_element_type=jnp.float32) + btL_ref[...]

    om = 1.0 - m
    u_ref[...] = (mx + om * (x - t) * jnp.exp(-s)).astype(u_ref.dtype)
    ldj_ref[...] = (-om * s).astype(ldj_ref.dtype)


def linear_masked_coupling_forward(x, mask, params, *, tile_b=None):
    """Pallas forward of LinearMaskedCoupling (y=None).

    Returns (u, log_abs_det_jacobian); u has x.dtype, the log-det is float32.
    """
    B, D = x.shape
    ws0, bs0, wsh, bsh, wsL, bsL, wt0, bt0, wth, bth, wtL, btL = params
    H = ws0.shape[1]
    n_layers = wsh.shape[0]
    f32 = jnp.float32

    Dp = _round_up(max(D, _LANE), _LANE)
    Hp = _round_up(max(H, _LANE), _LANE)

    # -- per-row mask, exactly as the module: mask.repeat(n_repeat+1,1).view(-1,1)[:B]
    mask_flat = mask.reshape(-1)
    n_repeat = B // mask_flat.size
    mask_rows = jnp.tile(mask_flat, n_repeat + 1)[:B].reshape(B, 1).astype(f32)

    # -- batch tiling: large tiles, but keep >=2 parallel steps for megacore
    if tile_b is None:
        if B >= 2 * _SUBLANE:
            tile_b = min(256, _round_up(pl.cdiv(B, 2), _SUBLANE))
        else:
            tile_b = _round_up(B, _SUBLANE)
    tile_b = max(_SUBLANE, _round_up(tile_b, _SUBLANE))
    Bp = _round_up(B, tile_b)

    x_p = jnp.pad(x, ((0, Bp - B), (0, Dp - D)))
    mask_p = jnp.pad(mask_rows, ((0, Bp - B), (0, 0)))

    # -- zero-pad weights to lane-dense shapes (exact: padded rows/cols contribute 0)
    def pad2(a, r, c):
        return jnp.pad(a.astype(f32), ((0, r - a.shape[0]), (0, c - a.shape[1])))

    # fused layer-0 weights: (Dp, 2*Hp) so both nets come out of one MXU pass
    w0 = jnp.concatenate([pad2(ws0, Dp, Hp), pad2(wt0, Dp, Hp)], axis=1)
    b0 = jnp.concatenate([pad2(bs0, 1, Hp), pad2(bt0, 1, Hp)], axis=1)

    def pad_stack(w, b):
        if n_layers == 0:
            return (jnp.zeros((1, Hp, Hp), f32), jnp.zeros((1, 1, Hp), f32))
        wp = jnp.pad(w.astype(f32), ((0, 0), (0, Hp - H), (0, Hp - H)))
        bp = jnp.pad(b.astype(f32), ((0, 0), (0, 0), (0, Hp - H)))
        return wp, bp

    wsh_p, bsh_p = pad_stack(wsh, bsh)
    wth_p, bth_p = pad_stack(wth, bth)
    wsL_p, bsL_p = pad2(wsL, Hp, Dp), pad2(bsL, 1, Dp)
    wtL_p, btL_p = pad2(wtL, Hp, Dp), pad2(btL, 1, Dp)

    weights = (w0, b0, wsh_p, bsh_p, wth_p, bth_p, wsL_p, bsL_p, wtL_p, btL_p)

    # -- VMEM budget check (weights are fully resident + double-buffered tiles)
    weight_bytes = sum(int(a.size) * a.dtype.itemsize for a in weights)
    tile_bytes = tile_b * Dp * 4 * 3 + tile_b * _LANE * 4   # x, u, ldj tiles + mask
    vmem_needed = 2 * (weight_bytes + tile_bytes)           # double buffering
    assert vmem_needed < 56 * 1024 * 1024, (
        "weight stack too large for resident-VMEM strategy; stream layers instead "
        f"(needs ~{vmem_needed >> 20} MiB)")
    vmem_limit = int(min(60 << 20, max(16 << 20, 2 * vmem_needed)))

    def full_spec(arr):
        nd = arr.ndim
        return pl.BlockSpec(arr.shape, lambda i, _nd=nd: (0,) * _nd)

    grid = (Bp // tile_b,)
    in_specs = [
        pl.BlockSpec((tile_b, Dp), lambda i: (i, 0)),   # x
        pl.BlockSpec((tile_b, 1), lambda i: (i, 0)),    # per-row mask
    ] + [full_spec(w) for w in weights]
    out_specs = [
        pl.BlockSpec((tile_b, Dp), lambda i: (i, 0)),   # u
        pl.BlockSpec((tile_b, Dp), lambda i: (i, 0)),   # log_abs_det_jacobian
    ]
    out_shape = [
        jax.ShapeDtypeStruct((Bp, Dp), x.dtype),
        jax.ShapeDtypeStruct((Bp, Dp), jnp.float32),    # keep log-det in f32
    ]

    # -- advisory cost estimate for XLA scheduling
    matmul_flops = Bp * (2 * Dp * (2 * Hp)
                         + n_layers * 2 * (2 * Hp * Hp)
                         + 2 * (2 * Hp * Dp))
    transcendentals = Bp * ((n_layers + 1) * Hp + Dp)   # tanh chain + exp(-s)
    bytes_accessed = (x_p.size * x_p.dtype.itemsize
                      + mask_p.size * 4
                      + weight_bytes
                      + Bp * Dp * (x.dtype.itemsize + 4))
    cost = pl.CostEstimate(flops=int(matmul_flops),
                           transcendentals=int(transcendentals),
                           bytes_accessed=int(bytes_accessed))

    kernel = functools.partial(_coupling_kernel, int(n_layers), Hp)
    u_p, ldj_p = pl.pallas_call(
        kernel,
        grid=grid,
        in_specs=in_specs,
        out_specs=out_specs,
        out_shape=out_shape,
        compiler_params=pltpu.CompilerParams(
            dimension_semantics=("parallel",),
            vmem_limit_bytes=vmem_limit),
        cost_estimate=cost,
    )(x_p, mask_p, *weights)

    return u_p[:B, :D], ldj_p[:B, :D]


def init_params(key, input_size, hidden_size, n_layers, dtype=jnp.float32):
    """PyTorch-Linear-style init; t_net = copy.deepcopy(s_net) -> identical weights."""
    def lin(k, fan_in, fan_out):
        kw, kb = jax.random.split(k)
        bound = 1.0 / (fan_in ** 0.5)
        w = jax.random.uniform(kw, (fan_in, fan_out), dtype, -bound, bound)
        b = jax.random.uniform(kb, (1, fan_out), dtype, -bound, bound)
        return w, b

    keys = jax.random.split(key, n_layers + 2)
    ws0, bs0 = lin(keys[0], input_size, hidden_size)
    wsh_l, bsh_l = [], []
    for k in range(n_layers):
        w, b = lin(keys[1 + k], hidden_size, hidden_size)
        wsh_l.append(w)
        bsh_l.append(b)
    wsh = (jnp.stack(wsh_l) if n_layers > 0
           else jnp.zeros((0, hidden_size, hidden_size), dtype))
    bsh = (jnp.stack(bsh_l) if n_layers > 0
           else jnp.zeros((0, 1, hidden_size), dtype))
    wsL, bsL = lin(keys[-1], hidden_size, input_size)
    # t_net = copy.deepcopy(s_net): same parameter values, ReLU activations.
    return (ws0, bs0, wsh, bsh, wsL, bsL,
            ws0, bs0, wsh, bsh, wsL, bsL)


def ref_forward(x, mask, params):
    """Pure-JAX reference mirroring the PyTorch forward (y=None)."""
    B = x.shape[0]
    mask_flat = mask.reshape(-1)
    n_repeat = B // mask_flat.size
    m = jnp.tile(mask_flat, n_repeat + 1)[:B].reshape(B, 1).astype(jnp.float32)
    ws0, bs0, wsh, bsh, wsL, bsL, wt0, bt0, wth, bth, wtL, btL = params
    n_layers = wsh.shape[0]
    xf = x.astype(jnp.float32)
    mx = xf * m

    h = mx @ ws0 + bs0
    for k in range(n_layers):
        h = jnp.tanh(h) @ wsh[k] + bsh[k]
    s = jnp.tanh(h) @ wsL + bsL

    h = mx @ wt0 + bt0
    for k in range(n_layers):
        h = jnp.maximum(h, 0.0) @ wth[k] + bth[k]
    t = jnp.maximum(h, 0.0) @ wtL + btL

    u = mx + (1.0 - m) * (xf - t) * jnp.exp(-s)
    ldj = -(1.0 - m) * s
    return u.astype(x.dtype), ldj


if __name__ == "__main__":
    input_size = 16
    hidden_size = 32
    n_layers = 2
    batch = 64

    key = jax.random.PRNGKey(0)
    k_x, k_p = jax.random.split(key)
    x = jax.random.normal(k_x, (batch, input_size), jnp.float32)
    # mask buffer as registered in __init__; its numel drives the per-row tiling
    mask = jnp.array([1.0, 0.0, 1.0, 0.0, 0.0, 1.0, 0.0, 1.0], jnp.float32)
    params = init_params(k_p, input_size, hidden_size, n_layers)

    fwd = jax.jit(linear_masked_coupling_forward)
    u, ldj = fwd(x, mask, params)
    u, ldj = jax.block_until_ready(u), jax.block_until_ready(ldj)

    u_ref, ldj_ref = ref_forward(x, mask, params)
    assert u.shape == (batch, input_size) and ldj.shape == (batch, input_size)
    assert jnp.allclose(u, u_ref, atol=1e-5, rtol=1e-5), "u mismatch"
    assert jnp.allclose(ldj, ldj_ref, atol=1e-5, rtol=1e-5), "log_abs_det_jacobian mismatch"

    print("KERNEL_OK")
</pallas_src>

<mosaic_0001>
module attributes {stable_mosaic.version = 11 : i64} {
  func.func @_coupling_kernel(%arg0: i32, %arg1: memref<32x128xf32, #tpu.memory_space<vmem>>, %arg2: memref<32x1xf32, #tpu.memory_space<vmem>>, %arg3: memref<128x256xf32, #tpu.memory_space<vmem>>, %arg4: memref<1x256xf32, #tpu.memory_space<vmem>>, %arg5: memref<2x128x128xf32, #tpu.memory_space<vmem>>, %arg6: memref<2x1x128xf32, #tpu.memory_space<vmem>>, %arg7: memref<2x128x128xf32, #tpu.memory_space<vmem>>, %arg8: memref<2x1x128xf32, #tpu.memory_space<vmem>>, %arg9: memref<128x128xf32, #tpu.memory_space<vmem>>, %arg10: memref<1x128xf32, #tpu.memory_space<vmem>>, %arg11: memref<128x128xf32, #tpu.memory_space<vmem>>, %arg12: memref<1x128xf32, #tpu.memory_space<vmem>>, %arg13: memref<32x128xf32, #tpu.memory_space<vmem>>, %arg14: memref<32x128xf32, #tpu.memory_space<vmem>>) attributes {dimension_semantics = [#tpu.dimension_semantics<parallel>], iteration_bounds = array<i64: 2>, scalar_prefetch = 0 : i64, scratch_operands = 0 : i64, tpu.core_type = #tpu.core_type<tc>, window_params = [{transform_indices = @transform_0, window_bounds = array<i64: 32, 128>}, {transform_indices = @transform_1, window_bounds = array<i64: 32, 1>}, {pipeline_mode = #tpu.pipeline_mode<synchronous>, transform_indices = @transform_2, window_bounds = array<i64: 128, 256>}, {pipeline_mode = #tpu.pipeline_mode<synchronous>, transform_indices = @transform_3, window_bounds = array<i64: 1, 256>}, {pipeline_mode = #tpu.pipeline_mode<synchronous>, transform_indices = @transform_4, window_bounds = array<i64: 2, 128, 128>}, {pipeline_mode = #tpu.pipeline_mode<synchronous>, transform_indices = @transform_5, window_bounds = array<i64: 2, 1, 128>}, {pipeline_mode = #tpu.pipeline_mode<synchronous>, transform_indices = @transform_6, window_bounds = array<i64: 2, 128, 128>}, {pipeline_mode = #tpu.pipeline_mode<synchronous>, transform_indices = @transform_7, window_bounds = array<i64: 2, 1, 128>}, {pipeline_mode = #tpu.pipeline_mode<synchronous>, transform_indices = @transform_8, window_bounds = array<i64: 128, 128>}, {pipeline_mode = #tpu.pipeline_mode<synchronous>, transform_indices = @transform_9, window_bounds = array<i64: 1, 128>}, {pipeline_mode = #tpu.pipeline_mode<synchronous>, transform_indices = @transform_10, window_bounds = array<i64: 128, 128>}, {pipeline_mode = #tpu.pipeline_mode<synchronous>, transform_indices = @transform_11, window_bounds = array<i64: 1, 128>}, {transform_indices = @transform_12, window_bounds = array<i64: 32, 128>}, {transform_indices = @transform_13, window_bounds = array<i64: 32, 128>}]} {
    %c0 = arith.constant 0 : index
    %c0_0 = arith.constant 0 : index
    %0 = vector.load %arg1[%c0, %c0_0] : memref<32x128xf32, #tpu.memory_space<vmem>>, vector<32x128xf32>
    %c0_1 = arith.constant 0 : index
    %c0_2 = arith.constant 0 : index
    %1 = vector.load %arg2[%c0_1, %c0_2] : memref<32x1xf32, #tpu.memory_space<vmem>>, vector<32x1xf32>
    %2 = vector.broadcast %1 : vector<32x1xf32> to vector<32x128xf32>
    %3 = arith.mulf %0, %2 : vector<32x128xf32>
    %c0_3 = arith.constant 0 : index
    %c0_4 = arith.constant 0 : index
    %4 = vector.load %arg3[%c0_3, %c0_4] : memref<128x256xf32, #tpu.memory_space<vmem>>, vector<128x256xf32>
    %cst = arith.constant dense<0.000000e+00> : vector<32x256xf32>
    %5 = tpu.matmul %3, %4, %cst {dimension_numbers = #tpu.dot_dimension_numbers<[1], [0], [0], [1], [0, 0, 1, 1], [], []>} : vector<32x128xf32>, vector<128x256xf32>, vector<32x256xf32> -> vector<32x256xf32>
    %c0_5 = arith.constant 0 : index
    %c0_6 = arith.constant 0 : index
    %6 = vector.load %arg4[%c0_5, %c0_6] : memref<1x256xf32, #tpu.memory_space<vmem>>, vector<1x256xf32>
    %7 = vector.broadcast %6 : vector<1x256xf32> to vector<32x256xf32>
    %8 = arith.addf %5, %7 : vector<32x256xf32>
    %9 = vector.extract_strided_slice %8 {offsets = [0, 0], sizes = [32, 128], strides = [1, 1]} : vector<32x256xf32> to vector<32x128xf32>
    %10 = vector.extract_strided_slice %8 {offsets = [0, 128], sizes = [32, 128], strides = [1, 1]} : vector<32x256xf32> to vector<32x128xf32>
    %11 = math.tanh %9 : vector<32x128xf32>
    %c0_7 = arith.constant 0 : index
    %c0_8 = arith.constant 0 : index
    %c0_9 = arith.constant 0 : index
    %12 = vector.load %arg5[%c0_7, %c0_8, %c0_9] : memref<2x128x128xf32, #tpu.memory_space<vmem>>, vector<1x128x128xf32>
    %13 = vector.shape_cast %12 : vector<1x128x128xf32> to vector<128x128xf32>
    %cst_10 = arith.constant dense<0.000000e+00> : vector<32x128xf32>
    %14 = tpu.matmul %11, %13, %cst_10 {dimension_numbers = #tpu.dot_dimension_numbers<[1], [0], [0], [1], [0, 0, 1, 1], [], []>} : vector<32x128xf32>, vector<128x128xf32>, vector<32x128xf32> -> vector<32x128xf32>
    %c0_11 = arith.constant 0 : index
    %c0_12 = arith.constant 0 : index
    %c0_13 = arith.constant 0 : index
    %15 = vector.load %arg6[%c0_11, %c0_12, %c0_13] : memref<2x1x128xf32, #tpu.memory_space<vmem>>, vector<1x1x128xf32>
    %16 = vector.shape_cast %15 : vector<1x1x128xf32> to vector<1x128xf32>
    %17 = vector.broadcast %16 : vector<1x128xf32> to vector<32x128xf32>
    %18 = arith.addf %14, %17 : vector<32x128xf32>
    %cst_14 = arith.constant 0.000000e+00 : f32
    %19 = vector.broadcast %cst_14 : f32 to vector<32x128xf32>
    %20 = arith.maximumf %10, %19 : vector<32x128xf32>
    %c0_15 = arith.constant 0 : index
    %c0_16 = arith.constant 0 : index
    %c0_17 = arith.constant 0 : index
    %21 = vector.load %arg7[%c0_15, %c0_16, %c0_17] : memref<2x128x128xf32, #tpu.memory_space<vmem>>, vector<1x128x128xf32>
    %22 = vector.shape_cast %21 : vector<1x128x128xf32> to vector<128x128xf32>
    %cst_18 = arith.constant dense<0.000000e+00> : vector<32x128xf32>
    %23 = tpu.matmul %20, %22, %cst_18 {dimension_numbers = #tpu.dot_dimension_numbers<[1], [0], [0], [1], [0, 0, 1, 1], [], []>} : vector<32x128xf32>, vector<128x128xf32>, vector<32x128xf32> -> vector<32x128xf32>
    %c0_19 = arith.constant 0 : index
    %c0_20 = arith.constant 0 : index
    %c0_21 = arith.constant 0 : index
    %24 = vector.load %arg8[%c0_19, %c0_20, %c0_21] : memref<2x1x128xf32, #tpu.memory_space<vmem>>, vector<1x1x128xf32>
    %25 = vector.shape_cast %24 : vector<1x1x128xf32> to vector<1x128xf32>
    %26 = vector.broadcast %25 : vector<1x128xf32> to vector<32x128xf32>
    %27 = arith.addf %23, %26 : vector<32x128xf32>
    %28 = math.tanh %18 : vector<32x128xf32>
    %c1 = arith.constant 1 : index
    %c0_22 = arith.constant 0 : index
    %c0_23 = arith.constant 0 : index
    %29 = vector.load %arg5[%c1, %c0_22, %c0_23] : memref<2x128x128xf32, #tpu.memory_space<vmem>>, vector<1x128x128xf32>
    %30 = vector.shape_cast %29 : vector<1x128x128xf32> to vector<128x128xf32>
    %cst_24 = arith.constant dense<0.000000e+00> : vector<32x128xf32>
    %31 = tpu.matmul %28, %30, %cst_24 {dimension_numbers = #tpu.dot_dimension_numbers<[1], [0], [0], [1], [0, 0, 1, 1], [], []>} : vector<32x128xf32>, vector<128x128xf32>, vector<32x128xf32> -> vector<32x128xf32>
    %c1_25 = arith.constant 1 : index
    %c0_26 = arith.constant 0 : index
    %c0_27 = arith.constant 0 : index
    %32 = vector.load %arg6[%c1_25, %c0_26, %c0_27] : memref<2x1x128xf32, #tpu.memory_space<vmem>>, vector<1x1x128xf32>
    %33 = vector.shape_cast %32 : vector<1x1x128xf32> to vector<1x128xf32>
    %34 = vector.broadcast %33 : vector<1x128xf32> to vector<32x128xf32>
    %35 = arith.addf %31, %34 : vector<32x128xf32>
    %cst_28 = arith.constant 0.000000e+00 : f32
    %36 = vector.broadcast %cst_28 : f32 to vector<32x128xf32>
    %37 = arith.maximumf %27, %36 : vector<32x128xf32>
    %c1_29 = arith.constant 1 : index
    %c0_30 = arith.constant 0 : index
    %c0_31 = arith.constant 0 : index
    %38 = vector.load %arg7[%c1_29, %c0_30, %c0_31] : memref<2x128x128xf32, #tpu.memory_space<vmem>>, vector<1x128x128xf32>
    %39 = vector.shape_cast %38 : vector<1x128x128xf32> to vector<128x128xf32>
    %cst_32 = arith.constant dense<0.000000e+00> : vector<32x128xf32>
    %40 = tpu.matmul %37, %39, %cst_32 {dimension_numbers = #tpu.dot_dimension_numbers<[1], [0], [0], [1], [0, 0, 1, 1], [], []>} : vector<32x128xf32>, vector<128x128xf32>, vector<32x128xf32> -> vector<32x128xf32>
    %c1_33 = arith.constant 1 : index
    %c0_34 = arith.constant 0 : index
    %c0_35 = arith.constant 0 : index
    %41 = vector.load %arg8[%c1_33, %c0_34, %c0_35] : memref<2x1x128xf32, #tpu.memory_space<vmem>>, vector<1x1x128xf32>
    %42 = vector.shape_cast %41 : vector<1x1x128xf32> to vector<1x128xf32>
    %43 = vector.broadcast %42 : vector<1x128xf32> to vector<32x128xf32>
    %44 = arith.addf %40, %43 : vector<32x128xf32>
    %45 = math.tanh %35 : vector<32x128xf32>
    %c0_36 = arith.constant 0 : index
    %c0_37 = arith.constant 0 : index
    %46 = vector.load %arg9[%c0_36, %c0_37] : memref<128x128xf32, #tpu.memory_space<vmem>>, vector<128x128xf32>
    %cst_38 = arith.constant dense<0.000000e+00> : vector<32x128xf32>
    %47 = tpu.matmul %45, %46, %cst_38 {dimension_numbers = #tpu.dot_dimension_numbers<[1], [0], [0], [1], [0, 0, 1, 1], [], []>} : vector<32x128xf32>, vector<128x128xf32>, vector<32x128xf32> -> vector<32x128xf32>
    %c0_39 = arith.constant 0 : index
    %c0_40 = arith.constant 0 : index
    %48 = vector.load %arg10[%c0_39, %c0_40] : memref<1x128xf32, #tpu.memory_space<vmem>>, vector<1x128xf32>
    %49 = vector.broadcast %48 : vector<1x128xf32> to vector<32x128xf32>
    %50 = arith.addf %47, %49 : vector<32x128xf32>
    %cst_41 = arith.constant 0.000000e+00 : f32
    %51 = vector.broadcast %cst_41 : f32 to vector<32x128xf32>
    %52 = arith.maximumf %44, %51 : vector<32x128xf32>
    %c0_42 = arith.constant 0 : index
    %c0_43 = arith.constant 0 : index
    %53 = vector.load %arg11[%c0_42, %c0_43] : memref<128x128xf32, #tpu.memory_space<vmem>>, vector<128x128xf32>
    %cst_44 = arith.constant dense<0.000000e+00> : vector<32x128xf32>
    %54 = tpu.matmul %52, %53, %cst_44 {dimension_numbers = #tpu.dot_dimension_numbers<[1], [0], [0], [1], [0, 0, 1, 1], [], []>} : vector<32x128xf32>, vector<128x128xf32>, vector<32x128xf32> -> vector<32x128xf32>
    %c0_45 = arith.constant 0 : index
    %c0_46 = arith.constant 0 : index
    %55 = vector.load %arg12[%c0_45, %c0_46] : memref<1x128xf32, #tpu.memory_space<vmem>>, vector<1x128xf32>
    %56 = vector.broadcast %55 : vector<1x128xf32> to vector<32x128xf32>
    %57 = arith.addf %54, %56 : vector<32x128xf32>
    %cst_47 = arith.constant 1.000000e+00 : f32
    %58 = vector.broadcast %cst_47 : f32 to vector<32x1xf32>
    %59 = arith.subf %58, %1 : vector<32x1xf32>
    %60 = arith.subf %0, %57 : vector<32x128xf32>
    %61 = vector.broadcast %59 : vector<32x1xf32> to vector<32x128xf32>
    %62 = arith.mulf %61, %60 : vector<32x128xf32>
    %cst_48 = arith.constant 0.000000e+00 : f32
    %63 = vector.broadcast %cst_48 : f32 to vector<32x128xf32>
    %64 = arith.subf %63, %50 : vector<32x128xf32>
    %65 = math.exp %64 : vector<32x128xf32>
    %66 = arith.mulf %62, %65 : vector<32x128xf32>
    %67 = arith.addf %3, %66 : vector<32x128xf32>
    %c0_49 = arith.constant 0 : index
    %c0_50 = arith.constant 0 : index
    %68 = vector.load %arg13[%c0_49, %c0_50] : memref<32x128xf32, #tpu.memory_space<vmem>>, vector<32x128xf32>
    tpu.vector_store %arg13[%c0_49, %c0_50], %67 {strides = array<i32>} : memref<32x128xf32, #tpu.memory_space<vmem>>, vector<32x128xf32>,
    %cst_51 = arith.constant 0.000000e+00 : f32
    %69 = vector.broadcast %cst_51 : f32 to vector<32x1xf32>
    %70 = arith.subf %69, %59 : vector<32x1xf32>
    %71 = vector.broadcast %70 : vector<32x1xf32> to vector<32x128xf32>
    %72 = arith.mulf %71, %50 : vector<32x128xf32>
    %c0_52 = arith.constant 0 : index
    %c0_53 = arith.constant 0 : index
    %73 = vector.load %arg14[%c0_52, %c0_53] : memref<32x128xf32, #tpu.memory_space<vmem>>, vector<32x128xf32>
    tpu.vector_store %arg14[%c0_52, %c0_53], %72 {strides = array<i32>} : memref<32x128xf32, #tpu.memory_space<vmem>>, vector<32x128xf32>,
    return
  }
  func.func @transform_0(%arg0: i32) -> (i32, i32) {
    %c0_i32 = arith.constant 0 : i32
    %c0_i32_0 = arith.constant 0 : i32
    return %arg0, %c0_i32 : i32, i32
  }
  func.func @transform_1(%arg0: i32) -> (i32, i32) {
    %c0_i32 = arith.constant 0 : i32
    %c0_i32_0 = arith.constant 0 : i32
    return %arg0, %c0_i32 : i32, i32
  }
  func.func @transform_2(%arg0: i32) -> (i32, i32) {
    %c0_i32 = arith.constant 0 : i32
    %c0_i32_0 = arith.constant 0 : i32
    %c0_i32_1 = arith.constant 0 : i32
    return %c0_i32, %c0_i32_0 : i32, i32
  }
  func.func @transform_3(%arg0: i32) -> (i32, i32) {
    %c0_i32 = arith.constant 0 : i32
    %c0_i32_0 = arith.constant 0 : i32
    %c0_i32_1 = arith.constant 0 : i32
    return %c0_i32, %c0_i32_0 : i32, i32
  }
  func.func @transform_4(%arg0: i32) -> (i32, i32, i32) {
    %c0_i32 = arith.constant 0 : i32
    %c0_i32_0 = arith.constant 0 : i32
    %c0_i32_1 = arith.constant 0 : i32
    %c0_i32_2 = arith.constant 0 : i32
    return %c0_i32, %c0_i32_0, %c0_i32_1 : i32, i32, i32
  }
  func.func @transform_5(%arg0: i32) -> (i32, i32, i32) {
    %c0_i32 = arith.constant 0 : i32
    %c0_i32_0 = arith.constant 0 : i32
    %c0_i32_1 = arith.constant 0 : i32
    %c0_i32_2 = arith.constant 0 : i32
    return %c0_i32, %c0_i32_0, %c0_i32_1 : i32, i32, i32
  }
  func.func @transform_6(%arg0: i32) -> (i32, i32, i32) {
    %c0_i32 = arith.constant 0 : i32
    %c0_i32_0 = arith.constant 0 : i32
    %c0_i32_1 = arith.constant 0 : i32
    %c0_i32_2 = arith.constant 0 : i32
    return %c0_i32, %c0_i32_0, %c0_i32_1 : i32, i32, i32
  }
  func.func @transform_7(%arg0: i32) -> (i32, i32, i32) {
    %c0_i32 = arith.constant 0 : i32
    %c0_i32_0 = arith.constant 0 : i32
    %c0_i32_1 = arith.constant 0 : i32
    %c0_i32_2 = arith.constant 0 : i32
    return %c0_i32, %c0_i32_0, %c0_i32_1 : i32, i32, i32
  }
  func.func @transform_8(%arg0: i32) -> (i32, i32) {
    %c0_i32 = arith.constant 0 : i32
    %c0_i32_0 = arith.constant 0 : i32
    %c0_i32_1 = arith.constant 0 : i32
    return %c0_i32, %c0_i32_0 : i32, i32
  }
  func.func @transform_9(%arg0: i32) -> (i32, i32) {
    %c0_i32 = arith.constant 0 : i32
    %c0_i32_0 = arith.constant 0 : i32
    %c0_i32_1 = arith.constant 0 : i32
    return %c0_i32, %c0_i32_0 : i32, i32
  }
  func.func @transform_10(%arg0: i32) -> (i32, i32) {
    %c0_i32 = arith.constant 0 : i32
    %c0_i32_0 = arith.constant 0 : i32
    %c0_i32_1 = arith.constant 0 : i32
    return %c0_i32, %c0_i32_0 : i32, i32
  }
  func.func @transform_11(%arg0: i32) -> (i32, i32) {
    %c0_i32 = arith.constant 0 : i32
    %c0_i32_0 = arith.constant 0 : i32
    %c0_i32_1 = arith.constant 0 : i32
    return %c0_i32, %c0_i32_0 : i32, i32
  }
  func.func @transform_12(%arg0: i32) -> (i32, i32) {
    %c0_i32 = arith.constant 0 : i32
    %c0_i32_0 = arith.constant 0 : i32
    return %arg0, %c0_i32 : i32, i32
  }
  func.func @transform_13(%arg0: i32) -> (i32, i32) {
    %c0_i32 = arith.constant 0 : i32
    %c0_i32_0 = arith.constant 0 : i32
    return %arg0, %c0_i32 : i32, i32
  }
}

</mosaic_0001>

<llo_original>
// kernel: linear_masked_coupling_forward.1
$region0: #{linear_masked_coupling_forward.1}
  #allocation0 [shape = 'u32[]', space=smem, size = 0x4, offset = 0x4, fixed_abs, tag = 'smem constant byte address 0x4 - core index']
  #allocation1 [shape = 'u32[144,128]{1,0:T(1,128)}', space=vmem, size = 0x12000, scoped, tag = 'internal scratch']
  %s0 = inlined_call_operand.vmem [shape: f32[64,128], index: 0, kind: input, shape index: {}]
  %s1 = inlined_call_operand.vmem [shape: f32[64,1], index: 1, kind: input, shape index: {}]
  %s2 = inlined_call_operand.vmem [shape: f32[128,256], index: 2, kind: input, shape index: {}]
  %s3 = inlined_call_operand.vmem [shape: f32[1,256], index: 3, kind: input, shape index: {}]
  %s4 = inlined_call_operand.vmem [shape: f32[2,128,128], index: 4, kind: input, shape index: {}]
  %s5 = inlined_call_operand.vmem [shape: f32[2,1,128], index: 5, kind: input, shape index: {}]
  %s6 = inlined_call_operand.vmem [shape: f32[2,128,128], index: 6, kind: input, shape index: {}]
  %s7 = inlined_call_operand.vmem [shape: f32[2,1,128], index: 7, kind: input, shape index: {}]
  %s8 = inlined_call_operand.vmem [shape: f32[128,128], index: 8, kind: input, shape index: {}]
  %s9 = inlined_call_operand.vmem [shape: f32[1,128], index: 9, kind: input, shape index: {}]
  %s10 = inlined_call_operand.vmem [shape: f32[128,128], index: 10, kind: input, shape index: {}]
  %s11 = inlined_call_operand.vmem [shape: f32[1,128], index: 11, kind: input, shape index: {}]
  %s12 = inlined_call_operand.vmem [shape: f32[64,128], index: 12, kind: output, shape index: {0}]
  %s13 = inlined_call_operand.vmem [shape: f32[64,128], index: 13, kind: output, shape index: {1}]
  %14 = xla_tuple %s12, %s13
  %s15 = sld [smem:[#allocation0]]
  $region89: #{linear_masked_coupling_forward.1} parent=0
    _
  %s17 = ssub.s32 1, %s15
  %s18 = scalar_select 0, %s17, %s15
  loop: start=0, step=1, limit=4
  $region2: #{linear_masked_coupling_forward.1} parent=0 // loop_pre_header
    _
  $region3: #{linear_masked_coupling_forward.1} parent=0 // loop_header
    %s20 = sphi 0, %s24
    %p21 = scmp.ge.s32.totalorder %s20, 4
    %s30 = sphi 0, %s32
    %s33 = sphi 0, %s30
    %s34 = sphi 0, %s33
    %s50 = sphi 0, %s34
    %s56 = sphi 0, %s58
    %s59 = sphi 0, %s56
    %s60 = sphi 0, %s59
    %s76 = sphi 0, %s60
    %s80 = sphi 0, %s80
    %s82 = sphi 0, %s80
    %s83 = sphi 0, %s82
    %s97 = sphi 0, %s83
    %s101 = sphi 0, %s101
    %s103 = sphi 0, %s101
    %s104 = sphi 0, %s103
    %s118 = sphi 0, %s104
    %s122 = sphi 0, %s122
    %s124 = sphi 0, %s122
    %s125 = sphi 0, %s124
    %s139 = sphi 0, %s125
    %s143 = sphi 0, %s143
    %s145 = sphi 0, %s143
    %s146 = sphi 0, %s145
    %s160 = sphi 0, %s146
    %s164 = sphi 0, %s164
    %s166 = sphi 0, %s164
    %s167 = sphi 0, %s166
    %s181 = sphi 0, %s167
    %s185 = sphi 0, %s185
    %s187 = sphi 0, %s185
    %s188 = sphi 0, %s187
    %s202 = sphi 0, %s188
    %s206 = sphi 0, %s206
    %s208 = sphi 0, %s206
    %s209 = sphi 0, %s208
    %s223 = sphi 0, %s209
    %s227 = sphi 0, %s227
    %s229 = sphi 0, %s227
    %s230 = sphi 0, %s229
    %s244 = sphi 0, %s230
    %s248 = sphi 0, %s248
    %s250 = sphi 0, %s248
    %s251 = sphi 0, %s250
    %s265 = sphi 0, %s251
    %s269 = sphi 0, %s269
    %s271 = sphi 0, %s269
    %s272 = sphi 0, %s271
    %s286 = sphi 0, %s272
    %s292 = sphi 0, %s294
    %s295 = sphi 0, %s292
    %s296 = sphi 0, %s295
    %s312 = sphi 0, %s296
    %s318 = sphi 0, %s320
    %s321 = sphi 0, %s318
    %s322 = sphi 0, %s321
    %s338 = sphi 0, %s322
  $region4: #{linear_masked_coupling_forward.1} parent=0 // loop_header_branch
    %23 = sbr.rel (%p21) target = $region8
  $region5: #{linear_masked_coupling_forward.1} parent=0 // loop_body
    %s25 = ssub.s32 %s20, 1
    %s26 = ssub.s32 %s20, 2
    %s27 = sadd.s32 %s20, 1
    %s28 = ssub.s32 %s20, %s27
    %p29 = scmp.eq.s32.totalorder %s28, 0
    %s31 = sadd.s32 %s30, 1
    %s32 = scalar_select %p29, %s30, %s31
    %p35 = pneg %p29
    %p36 = scmp.eq.s32.totalorder %s20, 1
    %p37 = por %p35, %p36
    %p38 = scmp.ne.s32.totalorder %s30, %s33
    %p39 = scmp.eq.s32.totalorder %s20, 0
    %p40 = por %p38, %p39
    %p41 = scmp.ne.s32.totalorder %s30, %s33
    %p42 = scmp.eq.s32.totalorder %s25, 1
    %p43 = por %p41, %p42
    %p44 = scmp.ne.s32.totalorder %s33, %s34
    %p45 = scmp.eq.s32.totalorder %s25, 0
    %p46 = por %p44, %p45
    %p47 = scmp.ne.s32.totalorder %s33, %s34
    %p48 = scmp.eq.s32.totalorder %s26, 1
    %p49 = por %p47, %p48
    %p51 = scmp.ne.s32.totalorder %s34, %s50
    %p52 = scmp.eq.s32.totalorder %s26, 0
    %p53 = por %p51, %p52
    %s54 = ssub.s32 %s20, %s27
    %p55 = scmp.eq.s32.totalorder %s54, 0
    %s57 = sadd.s32 %s56, 1
    %s58 = scalar_select %p55, %s56, %s57
    %p61 = pneg %p55
    %p62 = scmp.eq.s32.totalorder %s20, 1
    %p63 = por %p61, %p62
    %p64 = scmp.ne.s32.totalorder %s56, %s59
    %p65 = scmp.eq.s32.totalorder %s20, 0
    %p66 = por %p64, %p65
    %p67 = scmp.ne.s32.totalorder %s56, %s59
    %p68 = scmp.eq.s32.totalorder %s25, 1
    %p69 = por %p67, %p68
    %p70 = scmp.ne.s32.totalorder %s59, %s60
    %p71 = scmp.eq.s32.totalorder %s25, 0
    %p72 = por %p70, %p71
    %p73 = scmp.ne.s32.totalorder %s59, %s60
    %p74 = scmp.eq.s32.totalorder %s26, 1
    %p75 = por %p73, %p74
    %p77 = scmp.ne.s32.totalorder %s60, %s76
    %p78 = scmp.eq.s32.totalorder %s26, 0
    %p79 = por %p77, %p78
    %s81 = sadd.s32 %s80, 1
    %p84 = scmp.eq.s32.totalorder %s20, 1
    %p85 = scmp.ne.s32.totalorder %s80, %s82
    %p86 = scmp.eq.s32.totalorder %s20, 0
    %p87 = por %p85, %p86
    %p88 = scmp.ne.s32.totalorder %s80, %s82
    %p89 = scmp.eq.s32.totalorder %s25, 1
    %p90 = por %p88, %p89
    %p91 = scmp.ne.s32.totalorder %s82, %s83
    %p92 = scmp.eq.s32.totalorder %s25, 0
    %p93 = por %p91, %p92
    %p94 = scmp.ne.s32.totalorder %s82, %s83
    %p95 = scmp.eq.s32.totalorder %s26, 1
    %p96 = por %p94, %p95
    %p98 = scmp.ne.s32.totalorder %s83, %s97
    %p99 = scmp.eq.s32.totalorder %s26, 0
    %p100 = por %p98, %p99
    %s102 = sadd.s32 %s101, 1
    %p105 = scmp.eq.s32.totalorder %s20, 1
    %p106 = scmp.ne.s32.totalorder %s101, %s103
    %p107 = scmp.eq.s32.totalorder %s20, 0
    %p108 = por %p106, %p107
    %p109 = scmp.ne.s32.totalorder %s101, %s103
    %p110 = scmp.eq.s32.totalorder %s25, 1
    %p111 = por %p109, %p110
    %p112 = scmp.ne.s32.totalorder %s103, %s104
    %p113 = scmp.eq.s32.totalorder %s25, 0
    %p114 = por %p112, %p113
    %p115 = scmp.ne.s32.totalorder %s103, %s104
    %p116 = scmp.eq.s32.totalorder %s26, 1
    %p117 = por %p115, %p116
    %p119 = scmp.ne.s32.totalorder %s104, %s118
    %p120 = scmp.eq.s32.totalorder %s26, 0
    %p121 = por %p119, %p120
    %s123 = sadd.s32 %s122, 1
    %p126 = scmp.eq.s32.totalorder %s20, 1
    %p127 = scmp.ne.s32.totalorder %s122, %s124
    %p128 = scmp.eq.s32.totalorder %s20, 0
    %p129 = por %p127, %p128
    %p130 = scmp.ne.s32.totalorder %s122, %s124
    %p131 = scmp.eq.s32.totalorder %s25, 1
    %p132 = por %p130, %p131
    %p133 = scmp.ne.s32.totalorder %s124, %s125
    %p134 = scmp.eq.s32.totalorder %s25, 0
    %p135 = por %p133, %p134
    %p136 = scmp.ne.s32.totalorder %s124, %s125
    %p137 = scmp.eq.s32.totalorder %s26, 1
    %p138 = por %p136, %p137
    %p140 = scmp.ne.s32.totalorder %s125, %s139
    %p141 = scmp.eq.s32.totalorder %s26, 0
    %p142 = por %p140, %p141
    %s144 = sadd.s32 %s143, 1
    %p147 = scmp.eq.s32.totalorder %s20, 1
    %p148 = scmp.ne.s32.totalorder %s143, %s145
    %p149 = scmp.eq.s32.totalorder %s20, 0
    %p150 = por %p148, %p149
    %p151 = scmp.ne.s32.totalorder %s143, %s145
    %p152 = scmp.eq.s32.totalorder %s25, 1
    %p153 = por %p151, %p152
    %p154 = scmp.ne.s32.totalorder %s145, %s146
    %p155 = scmp.eq.s32.totalorder %s25, 0
    %p156 = por %p154, %p155
    %p157 = scmp.ne.s32.totalorder %s145, %s146
    %p158 = scmp.eq.s32.totalorder %s26, 1
    %p159 = por %p157, %p158
    %p161 = scmp.ne.s32.totalorder %s146, %s160
    %p162 = scmp.eq.s32.totalorder %s26, 0
    %p163 = por %p161, %p162
    %s165 = sadd.s32 %s164, 1
    %p168 = scmp.eq.s32.totalorder %s20, 1
    %p169 = scmp.ne.s32.totalorder %s164, %s166
    %p170 = scmp.eq.s32.totalorder %s20, 0
    %p171 = por %p169, %p170
    %p172 = scmp.ne.s32.totalorder %s164, %s166
    %p173 = scmp.eq.s32.totalorder %s25, 1
    %p174 = por %p172, %p173
    %p175 = scmp.ne.s32.totalorder %s166, %s167
    %p176 = scmp.eq.s32.totalorder %s25, 0
    %p177 = por %p175, %p176
    %p178 = scmp.ne.s32.totalorder %s166, %s167
    %p179 = scmp.eq.s32.totalorder %s26, 1
    %p180 = por %p178, %p179
    %p182 = scmp.ne.s32.totalorder %s167, %s181
    %p183 = scmp.eq.s32.totalorder %s26, 0
    %p184 = por %p182, %p183
    %s186 = sadd.s32 %s185, 1
    %p189 = scmp.eq.s32.totalorder %s20, 1
    %p190 = scmp.ne.s32.totalorder %s185, %s187
    %p191 = scmp.eq.s32.totalorder %s20, 0
    %p192 = por %p190, %p191
    %p193 = scmp.ne.s32.totalorder %s185, %s187
    %p194 = scmp.eq.s32.totalorder %s25, 1
    %p195 = por %p193, %p194
    %p196 = scmp.ne.s32.totalorder %s187, %s188
    %p197 = scmp.eq.s32.totalorder %s25, 0
    %p198 = por %p196, %p197
    %p199 = scmp.ne.s32.totalorder %s187, %s188
    %p200 = scmp.eq.s32.totalorder %s26, 1
    %p201 = por %p199, %p200
    %p203 = scmp.ne.s32.totalorder %s188, %s202
    %p204 = scmp.eq.s32.totalorder %s26, 0
    %p205 = por %p203, %p204
    %s207 = sadd.s32 %s206, 1
    %p210 = scmp.eq.s32.totalorder %s20, 1
    %p211 = scmp.ne.s32.totalorder %s206, %s208
    %p212 = scmp.eq.s32.totalorder %s20, 0
    %p213 = por %p211, %p212
    %p214 = scmp.ne.s32.totalorder %s206, %s208
    %p215 = scmp.eq.s32.totalorder %s25, 1
    %p216 = por %p214, %p215
    %p217 = scmp.ne.s32.totalorder %s208, %s209
    %p218 = scmp.eq.s32.totalorder %s25, 0
    %p219 = por %p217, %p218
    %p220 = scmp.ne.s32.totalorder %s208, %s209
    %p221 = scmp.eq.s32.totalorder %s26, 1
    %p222 = por %p220, %p221
    %p224 = scmp.ne.s32.totalorder %s209, %s223
    %p225 = scmp.eq.s32.totalorder %s26, 0
    %p226 = por %p224, %p225
    %s228 = sadd.s32 %s227, 1
    %p231 = scmp.eq.s32.totalorder %s20, 1
    %p232 = scmp.ne.s32.totalorder %s227, %s229
    %p233 = scmp.eq.s32.totalorder %s20, 0
    %p234 = por %p232, %p233
    %p235 = scmp.ne.s32.totalorder %s227, %s229
    %p236 = scmp.eq.s32.totalorder %s25, 1
    %p237 = por %p235, %p236
    %p238 = scmp.ne.s32.totalorder %s229, %s230
    %p239 = scmp.eq.s32.totalorder %s25, 0
    %p240 = por %p238, %p239
    %p241 = scmp.ne.s32.totalorder %s229, %s230
    %p242 = scmp.eq.s32.totalorder %s26, 1
    %p243 = por %p241, %p242
    %p245 = scmp.ne.s32.totalorder %s230, %s244
    %p246 = scmp.eq.s32.totalorder %s26, 0
    %p247 = por %p245, %p246
    %s249 = sadd.s32 %s248, 1
    %p252 = scmp.eq.s32.totalorder %s20, 1
    %p253 = scmp.ne.s32.totalorder %s248, %s250
    %p254 = scmp.eq.s32.totalorder %s20, 0
    %p255 = por %p253, %p254
    %p256 = scmp.ne.s32.totalorder %s248, %s250
    %p257 = scmp.eq.s32.totalorder %s25, 1
    %p258 = por %p256, %p257
    %p259 = scmp.ne.s32.totalorder %s250, %s251
    %p260 = scmp.eq.s32.totalorder %s25, 0
    %p261 = por %p259, %p260
    %p262 = scmp.ne.s32.totalorder %s250, %s251
    %p263 = scmp.eq.s32.totalorder %s26, 1
    %p264 = por %p262, %p263
    %p266 = scmp.ne.s32.totalorder %s251, %s265
    %p267 = scmp.eq.s32.totalorder %s26, 0
    %p268 = por %p266, %p267
    %s270 = sadd.s32 %s269, 1
    %p273 = scmp.eq.s32.totalorder %s20, 1
    %p274 = scmp.ne.s32.totalorder %s269, %s271
    %p275 = scmp.eq.s32.totalorder %s20, 0
    %p276 = por %p274, %p275
    %p277 = scmp.ne.s32.totalorder %s269, %s271
    %p278 = scmp.eq.s32.totalorder %s25, 1
    %p279 = por %p277, %p278
    %p280 = scmp.ne.s32.totalorder %s271, %s272
    %p281 = scmp.eq.s32.totalorder %s25, 0
    %p282 = por %p280, %p281
    %p283 = scmp.ne.s32.totalorder %s271, %s272
    %p284 = scmp.eq.s32.totalorder %s26, 1
    %p285 = por %p283, %p284
    %p287 = scmp.ne.s32.totalorder %s272, %s286
    %p288 = scmp.eq.s32.totalorder %s26, 0
    %p289 = por %p287, %p288
    %s290 = ssub.s32 %s20, %s27
    %p291 = scmp.eq.s32.totalorder %s290, 0
    %s293 = sadd.s32 %s292, 1
    %s294 = scalar_select %p291, %s292, %s293
    %p297 = pneg %p291
    %p298 = scmp.eq.s32.totalorder %s20, 1
    %p299 = por %p297, %p298
    %p300 = scmp.ne.s32.totalorder %s292, %s295
    %p301 = scmp.eq.s32.totalorder %s20, 0
    %p302 = por %p300, %p301
    %p303 = scmp.ne.s32.totalorder %s292, %s295
    %p304 = scmp.eq.s32.totalorder %s25, 1
    %p305 = por %p303, %p304
    %p306 = scmp.ne.s32.totalorder %s295, %s296
    %p307 = scmp.eq.s32.totalorder %s25, 0
    %p308 = por %p306, %p307
    %p309 = scmp.ne.s32.totalorder %s295, %s296
    %p310 = scmp.eq.s32.totalorder %s26, 1
    %p311 = por %p309, %p310
    %p313 = scmp.ne.s32.totalorder %s296, %s312
    %p314 = scmp.eq.s32.totalorder %s26, 0
    %p315 = por %p313, %p314
    %s316 = ssub.s32 %s20, %s27
    %p317 = scmp.eq.s32.totalorder %s316, 0
    %s319 = sadd.s32 %s318, 1
    %s320 = scalar_select %p317, %s318, %s319
    %p323 = pneg %p317
    %p324 = scmp.eq.s32.totalorder %s20, 1
    %p325 = por %p323, %p324
    %p326 = scmp.ne.s32.totalorder %s318, %s321
    %p327 = scmp.eq.s32.totalorder %s20, 0
    %p328 = por %p326, %p327
    %p329 = scmp.ne.s32.totalorder %s318, %s321
    %p330 = scmp.eq.s32.totalorder %s25, 1
    %p331 = por %p329, %p330
    %p332 = scmp.ne.s32.totalorder %s321, %s322
    %p333 = scmp.eq.s32.totalorder %s25, 0
    %p334 = por %p332, %p333
    %p335 = scmp.ne.s32.totalorder %s321, %s322
    %p336 = scmp.eq.s32.totalorder %s26, 1
    %p337 = por %p335, %p336
    %p339 = scmp.ne.s32.totalorder %s322, %s338
    %p340 = scmp.eq.s32.totalorder %s26, 0
    %p341 = por %p339, %p340
    %p342 = scmp.le.s32.totalorder 1, %s20
    %p343 = scmp.lt.s32.totalorder %s20, 3
    %p344 = pnand %p342, %p343
    %p345 = pneg %p344
    // Predicated region
    $region9: #{linear_masked_coupling_forward.1} parent=5 // pred_check
      _
    $region10: #{linear_masked_coupling_forward.1} parent=5 // pred_check_branch
      %347 = sbr.rel (%p344) target = $region12
    $region11: #{linear_masked_coupling_forward.1} parent=5 // pred_region
      %s348 = ssub.s32 %s20, 1
      // Predicated region
      $region13: #{linear_masked_coupling_forward.1} parent=11 // pred_check
        %p349 = pneg %p93
      $region14: #{linear_masked_coupling_forward.1} parent=11 // pred_check_branch
        %351 = sbr.rel (%p349) target = $region16
      $region15: #{linear_masked_coupling_forward.1} parent=11 // pred_region
        _
      $region16: #{linear_masked_coupling_forward.1} parent=11 // pred_fallthru
        _
      // Predicated region
      $region17: #{linear_masked_coupling_forward.1} parent=11 // pred_check
        %p352 = pneg %p114
      $region18: #{linear_masked_coupling_forward.1} parent=11 // pred_check_branch
        %354 = sbr.rel (%p352) target = $region20
      $region19: #{linear_masked_coupling_forward.1} parent=11 // pred_region
        _
      $region20: #{linear_masked_coupling_forward.1} parent=11 // pred_fallthru
        _
      // Predicated region
      $region21: #{linear_masked_coupling_forward.1} parent=11 // pred_check
        %p355 = pneg %p135
      $region22: #{linear_masked_coupling_forward.1} parent=11 // pred_check_branch
        %357 = sbr.rel (%p355) target = $region24
      $region23: #{linear_masked_coupling_forward.1} parent=11 // pred_region
        _
      $region24: #{linear_masked_coupling_forward.1} parent=11 // pred_fallthru
        _
      // Predicated region
      $region25: #{linear_masked_coupling_forward.1} parent=11 // pred_check
        %p358 = pneg %p156
      $region26: #{linear_masked_coupling_forward.1} parent=11 // pred_check_branch
        %360 = sbr.rel (%p358) target = $region28
      $region27: #{linear_masked_coupling_forward.1} parent=11 // pred_region
        _
      $region28: #{linear_masked_coupling_forward.1} parent=11 // pred_fallthru
        _
      // Predicated region
      $region29: #{linear_masked_coupling_forward.1} parent=11 // pred_check
        %p361 = pneg %p177
      $region30: #{linear_masked_coupling_forward.1} parent=11 // pred_check_branch
        %363 = sbr.rel (%p361) target = $region32
      $region31: #{linear_masked_coupling_forward.1} parent=11 // pred_region
        _
      $region32: #{linear_masked_coupling_forward.1} parent=11 // pred_fallthru
        _
      // Predicated region
      $region33: #{linear_masked_coupling_forward.1} parent=11 // pred_check
        %p364 = pneg %p198
      $region34: #{linear_masked_coupling_forward.1} parent=11 // pred_check_branch
        %366 = sbr.rel (%p364) target = $region36
      $region35: #{linear_masked_coupling_forward.1} parent=11 // pred_region
        _
      $region36: #{linear_masked_coupling_forward.1} parent=11 // pred_fallthru
        _
      // Predicated region
      $region37: #{linear_masked_coupling_forward.1} parent=11 // pred_check
        %p367 = pneg %p219
      $region38: #{linear_masked_coupling_forward.1} parent=11 // pred_check_branch
        %369 = sbr.rel (%p367) target = $region40
      $region39: #{linear_masked_coupling_forward.1} parent=11 // pred_region
        _
      $region40: #{linear_masked_coupling_forward.1} parent=11 // pred_fallthru
        _
      // Predicated region
      $region41: #{linear_masked_coupling_forward.1} parent=11 // pred_check
        %p370 = pneg %p240
      $region42: #{linear_masked_coupling_forward.1} parent=11 // pred_check_branch
        %372 = sbr.rel (%p370) target = $region44
      $region43: #{linear_masked_coupling_forward.1} parent=11 // pred_region
        _
      $region44: #{linear_masked_coupling_forward.1} parent=11 // pred_fallthru
        _
      // Predicated region
      $region45: #{linear_masked_coupling_forward.1} parent=11 // pred_check
        %p373 = pneg %p261
      $region46: #{linear_masked_coupling_forward.1} parent=11 // pred_check_branch
        %375 = sbr.rel (%p373) target = $region48
      $region47: #{linear_masked_coupling_forward.1} parent=11 // pred_region
        _
      $region48: #{linear_masked_coupling_forward.1} parent=11 // pred_fallthru
        _
      // Predicated region
      $region49: #{linear_masked_coupling_forward.1} parent=11 // pred_check
        %p376 = pneg %p282
      $region50: #{linear_masked_coupling_forward.1} parent=11 // pred_check_branch
        %378 = sbr.rel (%p376) target = $region52
      $region51: #{linear_masked_coupling_forward.1} parent=11 // pred_region
        _
      $region52: #{linear_masked_coupling_forward.1} parent=11 // pred_fallthru
        _
    $region12: #{linear_masked_coupling_forward.1} parent=5 // pred_fallthru
      _
    %p379 = scmp.lt.s32.totalorder %s20, 2
    // Predicated region
    $region53: #{linear_masked_coupling_forward.1} parent=5 // pred_check
      %p380 = pneg %p379
    $region54: #{linear_masked_coupling_forward.1} parent=5 // pred_check_branch
      %382 = sbr.rel (%p380) target = $region56
    $region55: #{linear_masked_coupling_forward.1} parent=5 // pred_region
      // Predicated region
      $region57: #{linear_masked_coupling_forward.1} parent=55 // pred_check
        %p383 = pneg %p40
      $region58: #{linear_masked_coupling_forward.1} parent=55 // pred_check_branch
        %385 = sbr.rel (%p383) target = $region60
      $region59: #{linear_masked_coupling_forward.1} parent=55 // pred_region
        %s386 = smul.u32 4, %s20
        %p387 = scmp.lt.s32.totalorder %s386, 7
        %s388 = scalar_select %p387, %s386, 7
        %s389 = smul.addr %s388, 8
        %s390 = scalar_lea.vmem %s0, %s389
        %s391 = smul.u32 4, %s20
      $region60: #{linear_masked_coupling_forward.1} parent=55 // pred_fallthru
        _
      // Predicated region
      $region61: #{linear_masked_coupling_forward.1} parent=55 // pred_check
        %p392 = pneg %p66
      $region62: #{linear_masked_coupling_forward.1} parent=55 // pred_check_branch
        %394 = sbr.rel (%p392) target = $region64
      $region63: #{linear_masked_coupling_forward.1} parent=55 // pred_region
        %s395 = smul.u32 4, %s20
        %p396 = scmp.lt.s32.totalorder %s395, 7
        %s397 = scalar_select %p396, %s395, 7
        %s398 = smul.addr %s397, 8
        %s399 = scalar_lea.vmem %s1, %s398
        %s400 = smul.u32 4, %s20
      $region64: #{linear_masked_coupling_forward.1} parent=55 // pred_fallthru
        _
    $region56: #{linear_masked_coupling_forward.1} parent=5 // pred_fallthru
      _
    %p401 = scmp.le.s32.totalorder 1, %s20
    %p402 = scmp.lt.s32.totalorder %s20, 3
    %p403 = pnand %p401, %p402
    %p404 = pneg %p403
    // Predicated region
    $region65: #{linear_masked_coupling_forward.1} parent=5 // pred_check
      _
    $region66: #{linear_masked_coupling_forward.1} parent=5 // pred_check_branch
      %406 = sbr.rel (%p403) target = $region68
    $region67: #{linear_masked_coupling_forward.1} parent=5 // pred_region
      %s407 = ssub.s32 %s20, 1
      %s408 = smul.u32 4, %s25
      %p409 = scmp.lt.s32.totalorder %s408, 7
      %s410 = scalar_select %p409, %s408, 7
      %s411 = smul.addr %s410, 8
      %s412 = scalar_lea.vmem %s0, %s411
      %p413 = pneg %p46
      %p414 = pneg %p43
      %s415 = smul.u32 4, %s25
      %p416 = scmp.lt.s32.totalorder %s415, 7
      %s417 = scalar_select %p416, %s415, 7
      %s418 = smul.addr %s417, 8
      %s419 = scalar_lea.vmem %s1, %s418
      %p420 = pneg %p72
      %p421 = pneg %p69
      %p422 = pneg %p93
      %p423 = pneg %p90
      %p424 = pneg %p114
      %p425 = pneg %p111
      %p426 = pneg %p135
      %p427 = pneg %p132
      %p428 = pneg %p156
      %p429 = pneg %p153
      %p430 = pneg %p177
      %p431 = pneg %p174
      %p432 = pneg %p198
      %p433 = pneg %p195
      %p434 = pneg %p219
      %p435 = pneg %p216
      %p436 = pneg %p240
      %p437 = pneg %p237
      %p438 = pneg %p261
      %p439 = pneg %p258
      %p440 = pneg %p282
      %p441 = pneg %p279
      %p442 = pneg %p308
      %p443 = pneg %p305
      %s444 = smul.u32 4, %s25
      %p445 = scmp.lt.s32.totalorder %s444, 7
      %s446 = scalar_select %p445, %s444, 7
      %s447 = smul.addr %s446, 8
      %s448 = scalar_lea.vmem %s12, %s447
      %p449 = pneg %p334
      %p450 = pneg %p331
      %s451 = smul.u32 4, %s25
      %p452 = scmp.lt.s32.totalorder %s451, 7
      %s453 = scalar_select %p452, %s451, 7
      %s454 = smul.addr %s453, 8
      %s455 = scalar_lea.vmem %s13, %s454
      %s456 = smul.u32 4, %s25
      %p457 = scmp.lt.s32.totalorder %s456, 7
      %s458 = scalar_select %p457, %s456, 7
      %s459 = smul.addr %s458, 8
      %s460 = scalar_lea.vmem %s0, %s459
      %s461 = smul.u32 4, %s25
      %s462 = smul.u32 4, %s25
      %p463 = scmp.lt.s32.totalorder %s462, 7
      %s464 = scalar_select %p463, %s462, 7
      %s465 = smul.addr %s464, 8
      %s466 = scalar_lea.vmem %s1, %s465
      %s467 = smul.u32 4, %s25
      %s468 = smul.u32 4, %s25
      %p469 = scmp.lt.s32.totalorder %s468, 7
      %s470 = scalar_select %p469, %s468, 7
      %s471 = smul.addr %s470, 8
      %s472 = scalar_lea.vmem %s12, %s471
      %s473 = smul.u32 4, %s25
      %s474 = smul.u32 4, %s25
      %p475 = scmp.lt.s32.totalorder %s474, 7
      %s476 = scalar_select %p475, %s474, 7
      %s477 = smul.addr %s476, 8
      %s478 = scalar_lea.vmem %s13, %s477
      %s479 = smul.u32 4, %s25
      %v480 = vld [vmem:[%s460] sm:$0xff]
      %v481 = vld [vmem:[%s460 + $0x8] sm:$0xff]
      %v482 = vld [vmem:[%s460 + $0x10] sm:$0xff]
      %v483 = vld [vmem:[%s460 + $0x18] sm:$0xff]
      %v484 = vld [vmem:[%s466] sm:$0xff]
      %v485 = vld [vmem:[%s466 + $0x8] sm:$0xff]
      %v486 = vld [vmem:[%s466 + $0x10] sm:$0xff]
      %v487 = vld [vmem:[%s466 + $0x18] sm:$0xff]
      %489 = vset.pattern.permute.xlu0 0
      %490 = vperm.xlu0 %489, %v484
      %v491 = vpop.permute.xlu0 %490
      %494 = vset.pattern.permute.xlu0 0
      %495 = vperm.xlu0 %494, %v485
      %v496 = vpop.permute.xlu0 %495
      %499 = vset.pattern.permute.xlu0 0
      %500 = vperm.xlu0 %499, %v486
      %v501 = vpop.permute.xlu0 %500
      %504 = vset.pattern.permute.xlu0 0
      %505 = vperm.xlu0 %504, %v487
      %v506 = vpop.permute.xlu0 %505
      %v508 = vmul.f32 %v480, %v491
      %v509 = vmul.f32 %v481, %v496
      %v510 = vmul.f32 %v482, %v501
      %v511 = vmul.f32 %v483, %v506
      %v512 = vld [vmem:[%s2] sm:$0xff]
      %v513 = vld [vmem:[%s2 + $0x8] sm:$0xff]
      %v514 = vld [vmem:[%s2 + $0x10] sm:$0xff]
      %v515 = vld [vmem:[%s2 + $0x18] sm:$0xff]
      %v516 = vld [vmem:[%s2 + $0x20] sm:$0xff]
      %v517 = vld [vmem:[%s2 + $0x28] sm:$0xff]
      %v518 = vld [vmem:[%s2 + $0x30] sm:$0xff]
      %v519 = vld [vmem:[%s2 + $0x38] sm:$0xff]
      %v520 = vld [vmem:[%s2 + $0x40] sm:$0xff]
      %v521 = vld [vmem:[%s2 + $0x48] sm:$0xff]
      %v522 = vld [vmem:[%s2 + $0x50] sm:$0xff]
      %v523 = vld [vmem:[%s2 + $0x58] sm:$0xff]
      %v524 = vld [vmem:[%s2 + $0x60] sm:$0xff]
      %v525 = vld [vmem:[%s2 + $0x68] sm:$0xff]
      %v526 = vld [vmem:[%s2 + $0x70] sm:$0xff]
      %v527 = vld [vmem:[%s2 + $0x78] sm:$0xff]
      %v528 = vld [vmem:[%s2 + $0x80] sm:$0xff]
      %v529 = vld [vmem:[%s2 + $0x88] sm:$0xff]
      %v530 = vld [vmem:[%s2 + $0x90] sm:$0xff]
      %v531 = vld [vmem:[%s2 + $0x98] sm:$0xff]
      %v532 = vld [vmem:[%s2 + $0xa0] sm:$0xff]
      %v533 = vld [vmem:[%s2 + $0xa8] sm:$0xff]
      %v534 = vld [vmem:[%s2 + $0xb0] sm:$0xff]
      %v535 = vld [vmem:[%s2 + $0xb8] sm:$0xff]
      %v536 = vld [vmem:[%s2 + $0xc0] sm:$0xff]
      %v537 = vld [vmem:[%s2 + $0xc8] sm:$0xff]
      %v538 = vld [vmem:[%s2 + $0xd0] sm:$0xff]
      %v539 = vld [vmem:[%s2 + $0xd8] sm:$0xff]
      %v540 = vld [vmem:[%s2 + $0xe0] sm:$0xff]
      %v541 = vld [vmem:[%s2 + $0xe8] sm:$0xff]
      %v542 = vld [vmem:[%s2 + $0xf0] sm:$0xff]
      %v543 = vld [vmem:[%s2 + $0xf8] sm:$0xff]
      %v544 = vld [vmem:[%s3] sm:$0x3]
      %v546 = vlaneseq
      %v547 = vshrl.u32 %v546, 7
      %v548 = vsub.s32 0, %v547
      %v549 = vrot.slane %v544, %v548
      %v550 = vlaneseq
      %v551 = vshrl.u32 %v550, 7
      %v552 = vsub.s32 1, %v551
      %v553 = vrot.slane %v544, %v552
      %556 = vmatprep.subr.mxu0 %v543
      %557 = vmatpush1.msra.mxu0 %v542
      %558 = vmatprep.subr.mxu0 %v541
      %559 = vmatpush1.msra.mxu0 %v540
      %560 = vmatprep.subr.mxu0 %v539
      %561 = vmatpush1.msra.mxu0 %v538
      %562 = vmatprep.subr.mxu0 %v537
      %563 = vmatpush1.msra.mxu0 %v536
      %564 = vmatprep.subr.mxu0 %v535
      %565 = vmatpush1.msra.mxu0 %v534
      %566 = vmatprep.subr.mxu0 %v533
      %567 = vmatpush1.msra.mxu0 %v532
      %568 = vmatprep.subr.mxu0 %v531
      %569 = vmatpush1.msra.mxu0 %v530
      %570 = vmatprep.subr.mxu0 %v529
      %571 = vmatpush1.msra.mxu0 %v528
      %572 = vmatprep.subr.mxu0 %v527
      %573 = vmatpush1.msra.mxu0 %v526
      %574 = vmatprep.subr.mxu0 %v525
      %575 = vmatpush1.msra.mxu0 %v524
      %576 = vmatprep.subr.mxu0 %v523
      %577 = vmatpush1.msra.mxu0 %v522
      %578 = vmatprep.subr.mxu0 %v521
      %579 = vmatpush1.msra.mxu0 %v520
      %580 = vmatprep.subr.mxu0 %v519
      %581 = vmatpush1.msra.mxu0 %v518
      %582 = vmatprep.subr.mxu0 %v517
      %583 = vmatpush1.msra.mxu0 %v516
      %584 = vmatprep.subr.mxu0 %v515
      %585 = vmatpush1.msra.mxu0 %v514
      %586 = vmatprep.subr.mxu0 %v513
      %587 = vmatpush1.msra.mxu0 %v512
      %588 = vmatprep.subr.mxu0 0.0
      %589 = vmatpush2.msra.mxu0 0.0
      %590 = vmatprep.subr.mxu0 0.0
      %591 = vmatpush2.msra.mxu0 0.0
      %592 = vmatprep.subr.mxu0 0.0
      %593 = vmatpush2.msra.mxu0 0.0
      %594 = vmatprep.subr.mxu0 0.0
      %595 = vmatpush2.msra.mxu0 0.0
      %596 = vmatprep.subr.mxu0 0.0
      %597 = vmatpush2.msra.mxu0 0.0
      %598 = vmatprep.subr.mxu0 0.0
      %599 = vmatpush2.msra.mxu0 0.0
      %600 = vmatprep.subr.mxu0 0.0
      %601 = vmatpush2.msra.mxu0 0.0
      %602 = vmatprep.subr.mxu0 0.0
      %603 = vmatpush2.msra.mxu0 0.0
      %604 = vmatprep.subr.mxu0 0.0
      %605 = vmatpush2.msra.mxu0 0.0
      %606 = vmatprep.subr.mxu0 0.0
      %607 = vmatpush2.msra.mxu0 0.0
      %608 = vmatprep.subr.mxu0 0.0
      %609 = vmatpush2.msra.mxu0 0.0
      %610 = vmatprep.subr.mxu0 0.0
      %611 = vmatpush2.msra.mxu0 0.0
      %612 = vmatprep.subr.mxu0 0.0
      %613 = vmatpush2.msra.mxu0 0.0
      %614 = vmatprep.subr.mxu0 0.0
      %615 = vmatpush2.msra.mxu0 0.0
      %616 = vmatprep.subr.mxu0 0.0
      %617 = vmatpush2.msra.mxu0 0.0
      %618 = vmatprep.subr.mxu0 0.0
      %619 = vmatpush2.msra.mxu0 0.0
      %620 = vmatprep.mubr.f32.mxu0 0.0
      %621 = vmatmul.mubr.f32.gmra.mxu0 %v508
      %v622 = vpop.f32.mrf.mxu0
      %v623 = vadd.f32 %v549, %v622
      %v624 = vpop.f32.mrf.mxu0
      %v625 = vadd.f32 %v553, %v624
      %626 = vmatprep.mubr.f32.mxu0 0.0
      %627 = vmatmul.mubr.f32.gmra.mxu0 %v509
      %v628 = vpop.f32.mrf.mxu0
      %v629 = vadd.f32 %v549, %v628
      %v630 = vpop.f32.mrf.mxu0
      %v631 = vadd.f32 %v553, %v630
      %632 = vmatprep.mubr.f32.mxu0 0.0
      %633 = vmatmul.mubr.f32.gmra.mxu0 %v510
      %v634 = vpop.f32.mrf.mxu0
      %v635 = vadd.f32 %v549, %v634
      %v636 = vpop.f32.mrf.mxu0
      %v637 = vadd.f32 %v553, %v636
      %638 = vmatprep.mubr.f32.mxu0 0.0
      %639 = vmatmul.mubr.f32.gmra.mxu0 %v511
      %v640 = vpop.f32.mrf.mxu0
      %v641 = vadd.f32 %v549, %v640
      %v642 = vpop.f32.mrf.mxu0
      %v643 = vadd.f32 %v553, %v642
      %644 = vdwg.mxu0
      %v645 = vtanh.pop %v623
      %v646 = vtanh.pop %v629
      %v647 = vtanh.pop %v635
      %v648 = vtanh.pop %v641
      %v649 = vld [vmem:[%s4] sm:$0xff]
      %v650 = vld [vmem:[%s4 + $0x8] sm:$0xff]
      %v651 = vld [vmem:[%s4 + $0x10] sm:$0xff]
      %v652 = vld [vmem:[%s4 + $0x18] sm:$0xff]
      %v653 = vld [vmem:[%s4 + $0x20] sm:$0xff]
      %v654 = vld [vmem:[%s4 + $0x28] sm:$0xff]
      %v655 = vld [vmem:[%s4 + $0x30] sm:$0xff]
      %v656 = vld [vmem:[%s4 + $0x38] sm:$0xff]
      %v657 = vld [vmem:[%s4 + $0x40] sm:$0xff]
      %v658 = vld [vmem:[%s4 + $0x48] sm:$0xff]
      %v659 = vld [vmem:[%s4 + $0x50] sm:$0xff]
      %v660 = vld [vmem:[%s4 + $0x58] sm:$0xff]
      %v661 = vld [vmem:[%s4 + $0x60] sm:$0xff]
      %v662 = vld [vmem:[%s4 + $0x68] sm:$0xff]
      %v663 = vld [vmem:[%s4 + $0x70] sm:$0xff]
      %v664 = vld [vmem:[%s4 + $0x78] sm:$0xff]
      %v665 = vld [vmem:[%s5] sm:$0x1]
      %v667 = vlaneseq
      %v668 = vshrl.u32 %v667, 7
      %v669 = vsub.s32 0, %v668
      %v670 = vrot.slane %v665, %v669
      %672 = vmatprep.subr.mxu0 0.0
      %673 = vmatpush1.msra.mxu0 %v664
      %674 = vmatprep.subr.mxu0 0.0
      %675 = vmatpush1.msra.mxu0 %v663
      %676 = vmatprep.subr.mxu0 0.0
      %677 = vmatpush1.msra.mxu0 %v662
      %678 = vmatprep.subr.mxu0 0.0
      %679 = vmatpush1.msra.mxu0 %v661
      %680 = vmatprep.subr.mxu0 0.0
      %681 = vmatpush1.msra.mxu0 %v660
      %682 = vmatprep.subr.mxu0 0.0
      %683 = vmatpush1.msra.mxu0 %v659
      %684 = vmatprep.subr.mxu0 0.0
      %685 = vmatpush1.msra.mxu0 %v658
      %686 = vmatprep.subr.mxu0 0.0
      %687 = vmatpush1.msra.mxu0 %v657
      %688 = vmatprep.subr.mxu0 0.0
      %689 = vmatpush1.msra.mxu0 %v656
      %690 = vmatprep.subr.mxu0 0.0
      %691 = vmatpush1.msra.mxu0 %v655
      %692 = vmatprep.subr.mxu0 0.0
      %693 = vmatpush1.msra.mxu0 %v654
      %694 = vmatprep.subr.mxu0 0.0
      %695 = vmatpush1.msra.mxu0 %v653
      %696 = vmatprep.subr.mxu0 0.0
      %697 = vmatpush1.msra.mxu0 %v652
      %698 = vmatprep.subr.mxu0 0.0
      %699 = vmatpush1.msra.mxu0 %v651
      %700 = vmatprep.subr.mxu0 0.0
      %701 = vmatpush1.msra.mxu0 %v650
      %702 = vmatprep.subr.mxu0 0.0
      %703 = vmatpush1.msra.mxu0 %v649
      %704 = vmatprep.subr.mxu0 0.0
      %705 = vmatpush2.msra.mxu0 0.0
      %706 = vmatprep.subr.mxu0 0.0
      %707 = vmatpush2.msra.mxu0 0.0
      %708 = vmatprep.subr.mxu0 0.0
      %709 = vmatpush2.msra.mxu0 0.0
      %710 = vmatprep.subr.mxu0 0.0
      %711 = vmatpush2.msra.mxu0 0.0
      %712 = vmatprep.subr.mxu0 0.0
      %713 = vmatpush2.msra.mxu0 0.0
      %714 = vmatprep.subr.mxu0 0.0
      %715 = vmatpush2.msra.mxu0 0.0
      %716 = vmatprep.subr.mxu0 0.0
      %717 = vmatpush2.msra.mxu0 0.0
      %718 = vmatprep.subr.mxu0 0.0
      %719 = vmatpush2.msra.mxu0 0.0
      %720 = vmatprep.subr.mxu0 0.0
      %721 = vmatpush2.msra.mxu0 0.0
      %722 = vmatprep.subr.mxu0 0.0
      %723 = vmatpush2.msra.mxu0 0.0
      %724 = vmatprep.subr.mxu0 0.0
      %725 = vmatpush2.msra.mxu0 0.0
      %726 = vmatprep.subr.mxu0 0.0
      %727 = vmatpush2.msra.mxu0 0.0
      %728 = vmatprep.subr.mxu0 0.0
      %729 = vmatpush2.msra.mxu0 0.0
      %730 = vmatprep.subr.mxu0 0.0
      %731 = vmatpush2.msra.mxu0 0.0
      %732 = vmatprep.subr.mxu0 0.0
      %733 = vmatpush2.msra.mxu0 0.0
      %734 = vmatprep.subr.mxu0 0.0
      %735 = vmatpush2.msra.mxu0 0.0
      %736 = vmatprep.mubr.f32.mxu0 0.0
      %737 = vmatmul.mubr.f32.gmra.mxu0 %v645
      %v738 = vpop.f32.mrf.mxu0
      %v739 = vadd.f32 %v670, %v738
      %v740 = vpop.f32.mrf.mxu0
      %741 = vmatprep.mubr.f32.mxu0 0.0
      %742 = vmatmul.mubr.f32.gmra.mxu0 %v646
      %v743 = vpop.f32.mrf.mxu0
      %v744 = vadd.f32 %v670, %v743
      %v745 = vpop.f32.mrf.mxu0
      %746 = vmatprep.mubr.f32.mxu0 0.0
      %747 = vmatmul.mubr.f32.gmra.mxu0 %v647
      %v748 = vpop.f32.mrf.mxu0
      %v749 = vadd.f32 %v670, %v748
      %v750 = vpop.f32.mrf.mxu0
      %751 = vmatprep.mubr.f32.mxu0 0.0
      %752 = vmatmul.mubr.f32.gmra.mxu0 %v648
      %v753 = vpop.f32.mrf.mxu0
      %v754 = vadd.f32 %v670, %v753
      %v755 = vpop.f32.mrf.mxu0
      %756 = vdwg.mxu0
      %v757 = vmax.f32 %v625, 0.0
      %v758 = vmax.f32 %v631, 0.0
      %v759 = vmax.f32 %v637, 0.0
      %v760 = vmax.f32 %v643, 0.0
      %v761 = vld [vmem:[%s6] sm:$0xff]
      %v762 = vld [vmem:[%s6 + $0x8] sm:$0xff]
      %v763 = vld [vmem:[%s6 + $0x10] sm:$0xff]
      %v764 = vld [vmem:[%s6 + $0x18] sm:$0xff]
      %v765 = vld [vmem:[%s6 + $0x20] sm:$0xff]
      %v766 = vld [vmem:[%s6 + $0x28] sm:$0xff]
      %v767 = vld [vmem:[%s6 + $0x30] sm:$0xff]
      %v768 = vld [vmem:[%s6 + $0x38] sm:$0xff]
      %v769 = vld [vmem:[%s6 + $0x40] sm:$0xff]
      %v770 = vld [vmem:[%s6 + $0x48] sm:$0xff]
      %v771 = vld [vmem:[%s6 + $0x50] sm:$0xff]
      %v772 = vld [vmem:[%s6 + $0x58] sm:$0xff]
      %v773 = vld [vmem:[%s6 + $0x60] sm:$0xff]
      %v774 = vld [vmem:[%s6 + $0x68] sm:$0xff]
      %v775 = vld [vmem:[%s6 + $0x70] sm:$0xff]
      %v776 = vld [vmem:[%s6 + $0x78] sm:$0xff]
      %v777 = vld [vmem:[%s7] sm:$0x1]
      %v779 = vlaneseq
      %v780 = vshrl.u32 %v779, 7
      %v781 = vsub.s32 0, %v780
      %v782 = vrot.slane %v777, %v781
      %784 = vmatprep.subr.mxu0 0.0
      %785 = vmatpush1.msra.mxu0 %v776
      %786 = vmatprep.subr.mxu0 0.0
      %787 = vmatpush1.msra.mxu0 %v775
      %788 = vmatprep.subr.mxu0 0.0
      %789 = vmatpush1.msra.mxu0 %v774
      %790 = vmatprep.subr.mxu0 0.0
      %791 = vmatpush1.msra.mxu0 %v773
      %792 = vmatprep.subr.mxu0 0.0
      %793 = vmatpush1.msra.mxu0 %v772
      %794 = vmatprep.subr.mxu0 0.0
      %795 = vmatpush1.msra.mxu0 %v771
      %796 = vmatprep.subr.mxu0 0.0
      %797 = vmatpush1.msra.mxu0 %v770
      %798 = vmatprep.subr.mxu0 0.0
      %799 = vmatpush1.msra.mxu0 %v769
      %800 = vmatprep.subr.mxu0 0.0
      %801 = vmatpush1.msra.mxu0 %v768
      %802 = vmatprep.subr.mxu0 0.0
      %803 = vmatpush1.msra.mxu0 %v767
      %804 = vmatprep.subr.mxu0 0.0
      %805 = vmatpush1.msra.mxu0 %v766
      %806 = vmatprep.subr.mxu0 0.0
      %807 = vmatpush1.msra.mxu0 %v765
      %808 = vmatprep.subr.mxu0 0.0
      %809 = vmatpush1.msra.mxu0 %v764
      %810 = vmatprep.subr.mxu0 0.0
      %811 = vmatpush1.msra.mxu0 %v763
      %812 = vmatprep.subr.mxu0 0.0
      %813 = vmatpush1.msra.mxu0 %v762
      %814 = vmatprep.subr.mxu0 0.0
      %815 = vmatpush1.msra.mxu0 %v761
      %816 = vmatprep.subr.mxu0 0.0
      %817 = vmatpush2.msra.mxu0 0.0
      %818 = vmatprep.subr.mxu0 0.0
      %819 = vmatpush2.msra.mxu0 0.0
      %820 = vmatprep.subr.mxu0 0.0
      %821 = vmatpush2.msra.mxu0 0.0
      %822 = vmatprep.subr.mxu0 0.0
      %823 = vmatpush2.msra.mxu0 0.0
      %824 = vmatprep.subr.mxu0 0.0
      %825 = vmatpush2.msra.mxu0 0.0
      %826 = vmatprep.subr.mxu0 0.0
      %827 = vmatpush2.msra.mxu0 0.0
      %828 = vmatprep.subr.mxu0 0.0
      %829 = vmatpush2.msra.mxu0 0.0
      %830 = vmatprep.subr.mxu0 0.0
      %831 = vmatpush2.msra.mxu0 0.0
      %832 = vmatprep.subr.mxu0 0.0
      %833 = vmatpush2.msra.mxu0 0.0
      %834 = vmatprep.subr.mxu0 0.0
      %835 = vmatpush2.msra.mxu0 0.0
      %836 = vmatprep.subr.mxu0 0.0
      %837 = vmatpush2.msra.mxu0 0.0
      %838 = vmatprep.subr.mxu0 0.0
      %839 = vmatpush2.msra.mxu0 0.0
      %840 = vmatprep.subr.mxu0 0.0
      %841 = vmatpush2.msra.mxu0 0.0
      %842 = vmatprep.subr.mxu0 0.0
      %843 = vmatpush2.msra.mxu0 0.0
      %844 = vmatprep.subr.mxu0 0.0
      %845 = vmatpush2.msra.mxu0 0.0
      %846 = vmatprep.subr.mxu0 0.0
      %847 = vmatpush2.msra.mxu0 0.0
      %848 = vmatprep.mubr.f32.mxu0 0.0
      %849 = vmatmul.mubr.f32.gmra.mxu0 %v757
      %v850 = vpop.f32.mrf.mxu0
      %v851 = vadd.f32 %v782, %v850
      %v852 = vpop.f32.mrf.mxu0
      %853 = vmatprep.mubr.f32.mxu0 0.0
      %854 = vmatmul.mubr.f32.gmra.mxu0 %v758
      %v855 = vpop.f32.mrf.mxu0
      %v856 = vadd.f32 %v782, %v855
      %v857 = vpop.f32.mrf.mxu0
      %858 = vmatprep.mubr.f32.mxu0 0.0
      %859 = vmatmul.mubr.f32.gmra.mxu0 %v759
      %v860 = vpop.f32.mrf.mxu0
      %v861 = vadd.f32 %v782, %v860
      %v862 = vpop.f32.mrf.mxu0
      %863 = vmatprep.mubr.f32.mxu0 0.0
      %864 = vmatmul.mubr.f32.gmra.mxu0 %v760
      %v865 = vpop.f32.mrf.mxu0
      %v866 = vadd.f32 %v782, %v865
      %v867 = vpop.f32.mrf.mxu0
      %868 = vdwg.mxu0
      %v869 = vtanh.pop %v739
      %v870 = vtanh.pop %v744
      %v871 = vtanh.pop %v749
      %v872 = vtanh.pop %v754
      %s873 = scalar_lea.vmem %s4, 128
      %v874 = vld [vmem:[%s873] sm:$0xff]
      %v875 = vld [vmem:[%s873 + $0x8] sm:$0xff]
      %v876 = vld [vmem:[%s873 + $0x10] sm:$0xff]
      %v877 = vld [vmem:[%s873 + $0x18] sm:$0xff]
      %v878 = vld [vmem:[%s873 + $0x20] sm:$0xff]
      %v879 = vld [vmem:[%s873 + $0x28] sm:$0xff]
      %v880 = vld [vmem:[%s873 + $0x30] sm:$0xff]
      %v881 = vld [vmem:[%s873 + $0x38] sm:$0xff]
      %v882 = vld [vmem:[%s873 + $0x40] sm:$0xff]
      %v883 = vld [vmem:[%s873 + $0x48] sm:$0xff]
      %v884 = vld [vmem:[%s873 + $0x50] sm:$0xff]
      %v885 = vld [vmem:[%s873 + $0x58] sm:$0xff]
      %v886 = vld [vmem:[%s873 + $0x60] sm:$0xff]
      %v887 = vld [vmem:[%s873 + $0x68] sm:$0xff]
      %v888 = vld [vmem:[%s873 + $0x70] sm:$0xff]
      %v889 = vld [vmem:[%s873 + $0x78] sm:$0xff]
      %s890 = scalar_lea.vmem %s5, 1
      %v891 = vld [vmem:[%s890] sm:$0x1]
      %v893 = vlaneseq
      %v894 = vshrl.u32 %v893, 7
      %v895 = vsub.s32 0, %v894
      %v896 = vrot.slane %v891, %v895
      %898 = vmatprep.subr.mxu0 0.0
      %899 = vmatpush1.msra.mxu0 %v889
      %900 = vmatprep.subr.mxu0 0.0
      %901 = vmatpush1.msra.mxu0 %v888
      %902 = vmatprep.subr.mxu0 0.0
      %903 = vmatpush1.msra.mxu0 %v887
      %904 = vmatprep.subr.mxu0 0.0
      %905 = vmatpush1.msra.mxu0 %v886
      %906 = vmatprep.subr.mxu0 0.0
      %907 = vmatpush1.msra.mxu0 %v885
      %908 = vmatprep.subr.mxu0 0.0
      %909 = vmatpush1.msra.mxu0 %v884
      %910 = vmatprep.subr.mxu0 0.0
      %911 = vmatpush1.msra.mxu0 %v883
      %912 = vmatprep.subr.mxu0 0.0
      %913 = vmatpush1.msra.mxu0 %v882
      %914 = vmatprep.subr.mxu0 0.0
      %915 = vmatpush1.msra.mxu0 %v881
      %916 = vmatprep.subr.mxu0 0.0
      %917 = vmatpush1.msra.mxu0 %v880
      %918 = vmatprep.subr.mxu0 0.0
      %919 = vmatpush1.msra.mxu0 %v879
      %920 = vmatprep.subr.mxu0 0.0
      %921 = vmatpush1.msra.mxu0 %v878
      %922 = vmatprep.subr.mxu0 0.0
      %923 = vmatpush1.msra.mxu0 %v877
      %924 = vmatprep.subr.mxu0 0.0
      %925 = vmatpush1.msra.mxu0 %v876
      %926 = vmatprep.subr.mxu0 0.0
      %927 = vmatpush1.msra.mxu0 %v875
      %928 = vmatprep.subr.mxu0 0.0
      %929 = vmatpush1.msra.mxu0 %v874
      %930 = vmatprep.subr.mxu0 0.0
      %931 = vmatpush2.msra.mxu0 0.0
      %932 = vmatprep.subr.mxu0 0.0
      %933 = vmatpush2.msra.mxu0 0.0
      %934 = vmatprep.subr.mxu0 0.0
      %935 = vmatpush2.msra.mxu0 0.0
      %936 = vmatprep.subr.mxu0 0.0
      %937 = vmatpush2.msra.mxu0 0.0
      %938 = vmatprep.subr.mxu0 0.0
      %939 = vmatpush2.msra.mxu0 0.0
      %940 = vmatprep.subr.mxu0 0.0
      %941 = vmatpush2.msra.mxu0 0.0
      %942 = vmatprep.subr.mxu0 0.0
      %943 = vmatpush2.msra.mxu0 0.0
      %944 = vmatprep.subr.mxu0 0.0
      %945 = vmatpush2.msra.mxu0 0.0
      %946 = vmatprep.subr.mxu0 0.0
      %947 = vmatpush2.msra.mxu0 0.0
      %948 = vmatprep.subr.mxu0 0.0
      %949 = vmatpush2.msra.mxu0 0.0
      %950 = vmatprep.subr.mxu0 0.0
      %951 = vmatpush2.msra.mxu0 0.0
      %952 = vmatprep.subr.mxu0 0.0
      %953 = vmatpush2.msra.mxu0 0.0
      %954 = vmatprep.subr.mxu0 0.0
      %955 = vmatpush2.msra.mxu0 0.0
      %956 = vmatprep.subr.mxu0 0.0
      %957 = vmatpush2.msra.mxu0 0.0
      %958 = vmatprep.subr.mxu0 0.0
      %959 = vmatpush2.msra.mxu0 0.0
      %960 = vmatprep.subr.mxu0 0.0
      %961 = vmatpush2.msra.mxu0 0.0
      %962 = vmatprep.mubr.f32.mxu0 0.0
      %963 = vmatmul.mubr.f32.gmra.mxu0 %v869
      %v964 = vpop.f32.mrf.mxu0
      %v965 = vadd.f32 %v896, %v964
      %v966 = vpop.f32.mrf.mxu0
      %967 = vmatprep.mubr.f32.mxu0 0.0
      %968 = vmatmul.mubr.f32.gmra.mxu0 %v870
      %v969 = vpop.f32.mrf.mxu0
      %v970 = vadd.f32 %v896, %v969
      %v971 = vpop.f32.mrf.mxu0
      %972 = vmatprep.mubr.f32.mxu0 0.0
      %973 = vmatmul.mubr.f32.gmra.mxu0 %v871
      %v974 = vpop.f32.mrf.mxu0
      %v975 = vadd.f32 %v896, %v974
      %v976 = vpop.f32.mrf.mxu0
      %977 = vmatprep.mubr.f32.mxu0 0.0
      %978 = vmatmul.mubr.f32.gmra.mxu0 %v872
      %v979 = vpop.f32.mrf.mxu0
      %v980 = vadd.f32 %v896, %v979
      %v981 = vpop.f32.mrf.mxu0
      %982 = vdwg.mxu0
      %v983 = vmax.f32 %v851, 0.0
      %v984 = vmax.f32 %v856, 0.0
      %v985 = vmax.f32 %v861, 0.0
      %v986 = vmax.f32 %v866, 0.0
      %s987 = scalar_lea.vmem %s6, 128
      %v988 = vld [vmem:[%s987] sm:$0xff]
      %v989 = vld [vmem:[%s987 + $0x8] sm:$0xff]
      %v990 = vld [vmem:[%s987 + $0x10] sm:$0xff]
      %v991 = vld [vmem:[%s987 + $0x18] sm:$0xff]
      %v992 = vld [vmem:[%s987 + $0x20] sm:$0xff]
      %v993 = vld [vmem:[%s987 + $0x28] sm:$0xff]
      %v994 = vld [vmem:[%s987 + $0x30] sm:$0xff]
      %v995 = vld [vmem:[%s987 + $0x38] sm:$0xff]
      %v996 = vld [vmem:[%s987 + $0x40] sm:$0xff]
      %v997 = vld [vmem:[%s987 + $0x48] sm:$0xff]
      %v998 = vld [vmem:[%s987 + $0x50] sm:$0xff]
      %v999 = vld [vmem:[%s987 + $0x58] sm:$0xff]
      %v1000 = vld [vmem:[%s987 + $0x60] sm:$0xff]
      %v1001 = vld [vmem:[%s987 + $0x68] sm:$0xff]
      %v1002 = vld [vmem:[%s987 + $0x70] sm:$0xff]
      %v1003 = vld [vmem:[%s987 + $0x78] sm:$0xff]
      %s1004 = scalar_lea.vmem %s7, 1
      %v1005 = vld [vmem:[%s1004] sm:$0x1]
      %v1007 = vlaneseq
      %v1008 = vshrl.u32 %v1007, 7
      %v1009 = vsub.s32 0, %v1008
      %v1010 = vrot.slane %v1005, %v1009
      %1012 = vmatprep.subr.mxu0 0.0
      %1013 = vmatpush1.msra.mxu0 %v1003
      %1014 = vmatprep.subr.mxu0 0.0
      %1015 = vmatpush1.msra.mxu0 %v1002
      %1016 = vmatprep.subr.mxu0 0.0
      %1017 = vmatpush1.msra.mxu0 %v1001
      %1018 = vmatprep.subr.mxu0 0.0
      %1019 = vmatpush1.msra.mxu0 %v1000
      %1020 = vmatprep.subr.mxu0 0.0
      %1021 = vmatpush1.msra.mxu0 %v999
      %1022 = vmatprep.subr.mxu0 0.0
      %1023 = vmatpush1.msra.mxu0 %v998
      %1024 = vmatprep.subr.mxu0 0.0
      %1025 = vmatpush1.msra.mxu0 %v997
      %1026 = vmatprep.subr.mxu0 0.0
      %1027 = vmatpush1.msra.mxu0 %v996
      %1028 = vmatprep.subr.mxu0 0.0
      %1029 = vmatpush1.msra.mxu0 %v995
      %1030 = vmatprep.subr.mxu0 0.0
      %1031 = vmatpush1.msra.mxu0 %v994
      %1032 = vmatprep.subr.mxu0 0.0
      %1033 = vmatpush1.msra.mxu0 %v993
      %1034 = vmatprep.subr.mxu0 0.0
      %1035 = vmatpush1.msra.mxu0 %v992
      %1036 = vmatprep.subr.mxu0 0.0
      %1037 = vmatpush1.msra.mxu0 %v991
      %1038 = vmatprep.subr.mxu0 0.0
      %1039 = vmatpush1.msra.mxu0 %v990
      %1040 = vmatprep.subr.mxu0 0.0
      %1041 = vmatpush1.msra.mxu0 %v989
      %1042 = vmatprep.subr.mxu0 0.0
      %1043 = vmatpush1.msra.mxu0 %v988
      %1044 = vmatprep.subr.mxu0 0.0
      %1045 = vmatpush2.msra.mxu0 0.0
      %1046 = vmatprep.subr.mxu0 0.0
      %1047 = vmatpush2.msra.mxu0 0.0
      %1048 = vmatprep.subr.mxu0 0.0
      %1049 = vmatpush2.msra.mxu0 0.0
      %1050 = vmatprep.subr.mxu0 0.0
      %1051 = vmatpush2.msra.mxu0 0.0
      %1052 = vmatprep.subr.mxu0 0.0
      %1053 = vmatpush2.msra.mxu0 0.0
      %1054 = vmatprep.subr.mxu0 0.0
      %1055 = vmatpush2.msra.mxu0 0.0
      %1056 = vmatprep.subr.mxu0 0.0
      %1057 = vmatpush2.msra.mxu0 0.0
      %1058 = vmatprep.subr.mxu0 0.0
      %1059 = vmatpush2.msra.mxu0 0.0
      %1060 = vmatprep.subr.mxu0 0.0
      %1061 = vmatpush2.msra.mxu0 0.0
      %1062 = vmatprep.subr.mxu0 0.0
      %1063 = vmatpush2.msra.mxu0 0.0
      %1064 = vmatprep.subr.mxu0 0.0
      %1065 = vmatpush2.msra.mxu0 0.0
      %1066 = vmatprep.subr.mxu0 0.0
      %1067 = vmatpush2.msra.mxu0 0.0
      %1068 = vmatprep.subr.mxu0 0.0
      %1069 = vmatpush2.msra.mxu0 0.0
      %1070 = vmatprep.subr.mxu0 0.0
      %1071 = vmatpush2.msra.mxu0 0.0
      %1072 = vmatprep.subr.mxu0 0.0
      %1073 = vmatpush2.msra.mxu0 0.0
      %1074 = vmatprep.subr.mxu0 0.0
      %1075 = vmatpush2.msra.mxu0 0.0
      %1076 = vmatprep.mubr.f32.mxu0 0.0
      %1077 = vmatmul.mubr.f32.gmra.mxu0 %v983
      %v1078 = vpop.f32.mrf.mxu0
      %v1079 = vadd.f32 %v1010, %v1078
      %v1080 = vpop.f32.mrf.mxu0
      %1081 = vmatprep.mubr.f32.mxu0 0.0
      %1082 = vmatmul.mubr.f32.gmra.mxu0 %v984
      %v1083 = vpop.f32.mrf.mxu0
      %v1084 = vadd.f32 %v1010, %v1083
      %v1085 = vpop.f32.mrf.mxu0
      %1086 = vmatprep.mubr.f32.mxu0 0.0
      %1087 = vmatmul.mubr.f32.gmra.mxu0 %v985
      %v1088 = vpop.f32.mrf.mxu0
      %v1089 = vadd.f32 %v1010, %v1088
      %v1090 = vpop.f32.mrf.mxu0
      %1091 = vmatprep.mubr.f32.mxu0 0.0
      %1092 = vmatmul.mubr.f32.gmra.mxu0 %v986
      %v1093 = vpop.f32.mrf.mxu0
      %v1094 = vadd.f32 %v1010, %v1093
      %v1095 = vpop.f32.mrf.mxu0
      %1096 = vdwg.mxu0
      %v1097 = vtanh.pop %v965
      %v1098 = vtanh.pop %v970
      %v1099 = vtanh.pop %v975
      %v1100 = vtanh.pop %v980
      %v1101 = vld [vmem:[%s8] sm:$0xff]
      %v1102 = vld [vmem:[%s8 + $0x8] sm:$0xff]
      %v1103 = vld [vmem:[%s8 + $0x10] sm:$0xff]
      %v1104 = vld [vmem:[%s8 + $0x18] sm:$0xff]
      %v1105 = vld [vmem:[%s8 + $0x20] sm:$0xff]
      %v1106 = vld [vmem:[%s8 + $0x28] sm:$0xff]
      %v1107 = vld [vmem:[%s8 + $0x30] sm:$0xff]
      %v1108 = vld [vmem:[%s8 + $0x38] sm:$0xff]
      %v1109 = vld [vmem:[%s8 + $0x40] sm:$0xff]
      %v1110 = vld [vmem:[%s8 + $0x48] sm:$0xff]
      %v1111 = vld [vmem:[%s8 + $0x50] sm:$0xff]
      %v1112 = vld [vmem:[%s8 + $0x58] sm:$0xff]
      %v1113 = vld [vmem:[%s8 + $0x60] sm:$0xff]
      %v1114 = vld [vmem:[%s8 + $0x68] sm:$0xff]
      %v1115 = vld [vmem:[%s8 + $0x70] sm:$0xff]
      %v1116 = vld [vmem:[%s8 + $0x78] sm:$0xff]
      %v1117 = vld [vmem:[%s9] sm:$0x1]
      %v1119 = vlaneseq
      %v1120 = vshrl.u32 %v1119, 7
      %v1121 = vsub.s32 0, %v1120
      %v1122 = vrot.slane %v1117, %v1121
      %1124 = vmatprep.subr.mxu0 0.0
      %1125 = vmatpush1.msra.mxu0 %v1116
      %1126 = vmatprep.subr.mxu0 0.0
      %1127 = vmatpush1.msra.mxu0 %v1115
      %1128 = vmatprep.subr.mxu0 0.0
      %1129 = vmatpush1.msra.mxu0 %v1114
      %1130 = vmatprep.subr.mxu0 0.0
      %1131 = vmatpush1.msra.mxu0 %v1113
      %1132 = vmatprep.subr.mxu0 0.0
      %1133 = vmatpush1.msra.mxu0 %v1112
      %1134 = vmatprep.subr.mxu0 0.0
      %1135 = vmatpush1.msra.mxu0 %v1111
      %1136 = vmatprep.subr.mxu0 0.0
      %1137 = vmatpush1.msra.mxu0 %v1110
      %1138 = vmatprep.subr.mxu0 0.0
      %1139 = vmatpush1.msra.mxu0 %v1109
      %1140 = vmatprep.subr.mxu0 0.0
      %1141 = vmatpush1.msra.mxu0 %v1108
      %1142 = vmatprep.subr.mxu0 0.0
      %1143 = vmatpush1.msra.mxu0 %v1107
      %1144 = vmatprep.subr.mxu0 0.0
      %1145 = vmatpush1.msra.mxu0 %v1106
      %1146 = vmatprep.subr.mxu0 0.0
      %1147 = vmatpush1.msra.mxu0 %v1105
      %1148 = vmatprep.subr.mxu0 0.0
      %1149 = vmatpush1.msra.mxu0 %v1104
      %1150 = vmatprep.subr.mxu0 0.0
      %1151 = vmatpush1.msra.mxu0 %v1103
      %1152 = vmatprep.subr.mxu0 0.0
      %1153 = vmatpush1.msra.mxu0 %v1102
      %1154 = vmatprep.subr.mxu0 0.0
      %1155 = vmatpush1.msra.mxu0 %v1101
      %1156 = vmatprep.subr.mxu0 0.0
      %1157 = vmatpush2.msra.mxu0 0.0
      %1158 = vmatprep.subr.mxu0 0.0
      %1159 = vmatpush2.msra.mxu0 0.0
      %1160 = vmatprep.subr.mxu0 0.0
      %1161 = vmatpush2.msra.mxu0 0.0
      %1162 = vmatprep.subr.mxu0 0.0
      %1163 = vmatpush2.msra.mxu0 0.0
      %1164 = vmatprep.subr.mxu0 0.0
      %1165 = vmatpush2.msra.mxu0 0.0
      %1166 = vmatprep.subr.mxu0 0.0
      %1167 = vmatpush2.msra.mxu0 0.0
      %1168 = vmatprep.subr.mxu0 0.0
      %1169 = vmatpush2.msra.mxu0 0.0
      %1170 = vmatprep.subr.mxu0 0.0
      %1171 = vmatpush2.msra.mxu0 0.0
      %1172 = vmatprep.subr.mxu0 0.0
      %1173 = vmatpush2.msra.mxu0 0.0
      %1174 = vmatprep.subr.mxu0 0.0
      %1175 = vmatpush2.msra.mxu0 0.0
      %1176 = vmatprep.subr.mxu0 0.0
      %1177 = vmatpush2.msra.mxu0 0.0
      %1178 = vmatprep.subr.mxu0 0.0
      %1179 = vmatpush2.msra.mxu0 0.0
      %1180 = vmatprep.subr.mxu0 0.0
      %1181 = vmatpush2.msra.mxu0 0.0
      %1182 = vmatprep.subr.mxu0 0.0
      %1183 = vmatpush2.msra.mxu0 0.0
      %1184 = vmatprep.subr.mxu0 0.0
      %1185 = vmatpush2.msra.mxu0 0.0
      %1186 = vmatprep.subr.mxu0 0.0
      %1187 = vmatpush2.msra.mxu0 0.0
      %1188 = vmatprep.mubr.f32.mxu0 0.0
      %1189 = vmatmul.mubr.f32.gmra.mxu0 %v1097
      %v1190 = vpop.f32.mrf.mxu0
      %v1191 = vadd.f32 %v1122, %v1190
      %v1192 = vpop.f32.mrf.mxu0
      %1193 = vmatprep.mubr.f32.mxu0 0.0
      %1194 = vmatmul.mubr.f32.gmra.mxu0 %v1098
      %v1195 = vpop.f32.mrf.mxu0
      %v1196 = vadd.f32 %v1122, %v1195
      %v1197 = vpop.f32.mrf.mxu0
      %1198 = vmatprep.mubr.f32.mxu0 0.0
      %1199 = vmatmul.mubr.f32.gmra.mxu0 %v1099
      %v1200 = vpop.f32.mrf.mxu0
      %v1201 = vadd.f32 %v1122, %v1200
      %v1202 = vpop.f32.mrf.mxu0
      %1203 = vmatprep.mubr.f32.mxu0 0.0
      %1204 = vmatmul.mubr.f32.gmra.mxu0 %v1100
      %v1205 = vpop.f32.mrf.mxu0
      %v1206 = vadd.f32 %v1122, %v1205
      %v1207 = vpop.f32.mrf.mxu0
      %1208 = vdwg.mxu0
      %v1209 = vmax.f32 %v1079, 0.0
      %v1210 = vmax.f32 %v1084, 0.0
      %v1211 = vmax.f32 %v1089, 0.0
      %v1212 = vmax.f32 %v1094, 0.0
      %v1213 = vld [vmem:[%s10] sm:$0xff]
      %v1214 = vld [vmem:[%s10 + $0x8] sm:$0xff]
      %v1215 = vld [vmem:[%s10 + $0x10] sm:$0xff]
      %v1216 = vld [vmem:[%s10 + $0x18] sm:$0xff]
      %v1217 = vld [vmem:[%s10 + $0x20] sm:$0xff]
      %v1218 = vld [vmem:[%s10 + $0x28] sm:$0xff]
      %v1219 = vld [vmem:[%s10 + $0x30] sm:$0xff]
      %v1220 = vld [vmem:[%s10 + $0x38] sm:$0xff]
      %v1221 = vld [vmem:[%s10 + $0x40] sm:$0xff]
      %v1222 = vld [vmem:[%s10 + $0x48] sm:$0xff]
      %v1223 = vld [vmem:[%s10 + $0x50] sm:$0xff]
      %v1224 = vld [vmem:[%s10 + $0x58] sm:$0xff]
      %v1225 = vld [vmem:[%s10 + $0x60] sm:$0xff]
      %v1226 = vld [vmem:[%s10 + $0x68] sm:$0xff]
      %v1227 = vld [vmem:[%s10 + $0x70] sm:$0xff]
      %v1228 = vld [vmem:[%s10 + $0x78] sm:$0xff]
      %v1229 = vld [vmem:[%s11] sm:$0x1]
      %v1231 = vlaneseq
      %v1232 = vshrl.u32 %v1231, 7
      %v1233 = vsub.s32 0, %v1232
      %v1234 = vrot.slane %v1229, %v1233
      %1236 = vmatprep.subr.mxu0 0.0
      %1237 = vmatpush1.msra.mxu0 %v1228
      %1238 = vmatprep.subr.mxu0 0.0
      %1239 = vmatpush1.msra.mxu0 %v1227
      %1240 = vmatprep.subr.mxu0 0.0
      %1241 = vmatpush1.msra.mxu0 %v1226
      %1242 = vmatprep.subr.mxu0 0.0
      %1243 = vmatpush1.msra.mxu0 %v1225
      %1244 = vmatprep.subr.mxu0 0.0
      %1245 = vmatpush1.msra.mxu0 %v1224
      %1246 = vmatprep.subr.mxu0 0.0
      %1247 = vmatpush1.msra.mxu0 %v1223
      %1248 = vmatprep.subr.mxu0 0.0
      %1249 = vmatpush1.msra.mxu0 %v1222
      %1250 = vmatprep.subr.mxu0 0.0
      %1251 = vmatpush1.msra.mxu0 %v1221
      %1252 = vmatprep.subr.mxu0 0.0
      %1253 = vmatpush1.msra.mxu0 %v1220
      %1254 = vmatprep.subr.mxu0 0.0
      %1255 = vmatpush1.msra.mxu0 %v1219
      %1256 = vmatprep.subr.mxu0 0.0
      %1257 = vmatpush1.msra.mxu0 %v1218
      %1258 = vmatprep.subr.mxu0 0.0
      %1259 = vmatpush1.msra.mxu0 %v1217
      %1260 = vmatprep.subr.mxu0 0.0
      %1261 = vmatpush1.msra.mxu0 %v1216
      %1262 = vmatprep.subr.mxu0 0.0
      %1263 = vmatpush1.msra.mxu0 %v1215
      %1264 = vmatprep.subr.mxu0 0.0
      %1265 = vmatpush1.msra.mxu0 %v1214
      %1266 = vmatprep.subr.mxu0 0.0
      %1267 = vmatpush1.msra.mxu0 %v1213
      %1268 = vmatprep.subr.mxu0 0.0
      %1269 = vmatpush2.msra.mxu0 0.0
      %1270 = vmatprep.subr.mxu0 0.0
      %1271 = vmatpush2.msra.mxu0 0.0
      %1272 = vmatprep.subr.mxu0 0.0
      %1273 = vmatpush2.msra.mxu0 0.0
      %1274 = vmatprep.subr.mxu0 0.0
      %1275 = vmatpush2.msra.mxu0 0.0
      %1276 = vmatprep.subr.mxu0 0.0
      %1277 = vmatpush2.msra.mxu0 0.0
      %1278 = vmatprep.subr.mxu0 0.0
      %1279 = vmatpush2.msra.mxu0 0.0
      %1280 = vmatprep.subr.mxu0 0.0
      %1281 = vmatpush2.msra.mxu0 0.0
      %1282 = vmatprep.subr.mxu0 0.0
      %1283 = vmatpush2.msra.mxu0 0.0
      %1284 = vmatprep.subr.mxu0 0.0
      %1285 = vmatpush2.msra.mxu0 0.0
      %1286 = vmatprep.subr.mxu0 0.0
      %1287 = vmatpush2.msra.mxu0 0.0
      %1288 = vmatprep.subr.mxu0 0.0
      %1289 = vmatpush2.msra.mxu0 0.0
      %1290 = vmatprep.subr.mxu0 0.0
      %1291 = vmatpush2.msra.mxu0 0.0
      %1292 = vmatprep.subr.mxu0 0.0
      %1293 = vmatpush2.msra.mxu0 0.0
      %1294 = vmatprep.subr.mxu0 0.0
      %1295 = vmatpush2.msra.mxu0 0.0
      %1296 = vmatprep.subr.mxu0 0.0
      %1297 = vmatpush2.msra.mxu0 0.0
      %1298 = vmatprep.subr.mxu0 0.0
      %1299 = vmatpush2.msra.mxu0 0.0
      %1300 = vmatprep.mubr.f32.mxu0 0.0
      %1301 = vmatmul.mubr.f32.gmra.mxu0 %v1209
      %v1302 = vpop.f32.mrf.mxu0
      %v1303 = vadd.f32 %v1234, %v1302
      %v1304 = vpop.f32.mrf.mxu0
      %1305 = vmatprep.mubr.f32.mxu0 0.0
      %1306 = vmatmul.mubr.f32.gmra.mxu0 %v1210
      %v1307 = vpop.f32.mrf.mxu0
      %v1308 = vadd.f32 %v1234, %v1307
      %v1309 = vpop.f32.mrf.mxu0
      %1310 = vmatprep.mubr.f32.mxu0 0.0
      %1311 = vmatmul.mubr.f32.gmra.mxu0 %v1211
      %v1312 = vpop.f32.mrf.mxu0
      %v1313 = vadd.f32 %v1234, %v1312
      %v1314 = vpop.f32.mrf.mxu0
      %1315 = vmatprep.mubr.f32.mxu0 0.0
      %1316 = vmatmul.mubr.f32.gmra.mxu0 %v1212
      %v1317 = vpop.f32.mrf.mxu0
      %v1318 = vadd.f32 %v1234, %v1317
      %v1319 = vpop.f32.mrf.mxu0
      %1320 = vdwg.mxu0
      %v1321 = vsub.f32 1.0, %v484
      %v1322 = vsub.f32 1.0, %v485
      %v1323 = vsub.f32 1.0, %v486
      %v1324 = vsub.f32 1.0, %v487
      %v1325 = vsub.f32 %v480, %v1303
      %v1326 = vsub.f32 %v481, %v1308
      %v1327 = vsub.f32 %v482, %v1313
      %v1328 = vsub.f32 %v483, %v1318
      %1330 = vset.pattern.permute.xlu0 0
      %1331 = vperm.xlu0 %1330, %v1321
      %v1332 = vpop.permute.xlu0 %1331
      %1335 = vset.pattern.permute.xlu0 0
      %1336 = vperm.xlu0 %1335, %v1322
      %v1337 = vpop.permute.xlu0 %1336
      %1340 = vset.pattern.permute.xlu0 0
      %1341 = vperm.xlu0 %1340, %v1323
      %v1342 = vpop.permute.xlu0 %1341
      %1345 = vset.pattern.permute.xlu0 0
      %1346 = vperm.xlu0 %1345, %v1324
      %v1347 = vpop.permute.xlu0 %1346
      %v1349 = vmul.f32 %v1332, %v1325
      %v1350 = vmul.f32 %v1337, %v1326
      %v1351 = vmul.f32 %v1342, %v1327
      %v1352 = vmul.f32 %v1347, %v1328
      %v1353 = vsub.f32 0.0, %v1191
      %v1354 = vsub.f32 0.0, %v1196
      %v1355 = vsub.f32 0.0, %v1201
      %v1356 = vsub.f32 0.0, %v1206
      %v1357 = vmul.f32 %v1353, 1.442695
      %v1358 = vpow.pop %v1357
      %v1359 = vmul.f32 %v1354, 1.442695
      %v1360 = vpow.pop %v1359
      %v1361 = vmul.f32 %v1355, 1.442695
      %v1362 = vpow.pop %v1361
      %v1363 = vmul.f32 %v1356, 1.442695
      %v1364 = vpow.pop %v1363
      %v1365 = vmul.f32 %v1349, %v1358
      %v1366 = vmul.f32 %v1350, %v1360
      %v1367 = vmul.f32 %v1351, %v1362
      %v1368 = vmul.f32 %v1352, %v1364
      %v1369 = vadd.f32 %v508, %v1365
      %v1370 = vadd.f32 %v509, %v1366
      %v1371 = vadd.f32 %v510, %v1367
      %v1372 = vadd.f32 %v511, %v1368
      %1373 = vst [vmem:[%s472] sm:$0xff] %v1369
      %1374 = vst [vmem:[%s472 + $0x8] sm:$0xff] %v1370
      %1375 = vst [vmem:[%s472 + $0x10] sm:$0xff] %v1371
      %1376 = vst [vmem:[%s472 + $0x18] sm:$0xff] %v1372
      %v1377 = vsub.f32 0.0, %v1321
      %v1378 = vsub.f32 0.0, %v1322
      %v1379 = vsub.f32 0.0, %v1323
      %v1380 = vsub.f32 0.0, %v1324
      %1382 = vset.pattern.permute.xlu0 0
      %1383 = vperm.xlu0 %1382, %v1377
      %v1384 = vpop.permute.xlu0 %1383
      %1387 = vset.pattern.permute.xlu0 0
      %1388 = vperm.xlu0 %1387, %v1378
      %v1389 = vpop.permute.xlu0 %1388
      %1392 = vset.pattern.permute.xlu0 0
      %1393 = vperm.xlu0 %1392, %v1379
      %v1394 = vpop.permute.xlu0 %1393
      %1397 = vset.pattern.permute.xlu0 0
      %1398 = vperm.xlu0 %1397, %v1380
      %v1399 = vpop.permute.xlu0 %1398
      %v1401 = vmul.f32 %v1384, %v1191
      %v1402 = vmul.f32 %v1389, %v1196
      %v1403 = vmul.f32 %v1394, %v1201
      %v1404 = vmul.f32 %v1399, %v1206
      %1405 = vst [vmem:[%s478] sm:$0xff] %v1401
      %1406 = vst [vmem:[%s478 + $0x8] sm:$0xff] %v1402
      %1407 = vst [vmem:[%s478 + $0x10] sm:$0xff] %v1403
      %1408 = vst [vmem:[%s478 + $0x18] sm:$0xff] %v1404
      %s1409 = smul.u32 4, %s25
      %p1410 = scmp.lt.s32.totalorder %s1409, 7
      %s1411 = scalar_select %p1410, %s1409, 7
      %s1412 = smul.addr %s1411, 8
      %s1413 = scalar_lea.vmem %s12, %s1412
      %s1414 = smul.u32 4, %s25
      %p1415 = scmp.lt.s32.totalorder %s1414, 7
      %s1416 = scalar_select %p1415, %s1414, 7
      %s1417 = smul.addr %s1416, 8
      %s1418 = scalar_lea.vmem %s13, %s1417
      // Predicated region
      $region69: #{linear_masked_coupling_forward.1} parent=67 // pred_check
        %p1419 = pneg %p305
      $region70: #{linear_masked_coupling_forward.1} parent=67 // pred_check_branch
        %1421 = sbr.rel (%p1419) target = $region72
      $region71: #{linear_masked_coupling_forward.1} parent=67 // pred_region
        %s1422 = smul.u32 4, %s25
      $region72: #{linear_masked_coupling_forward.1} parent=67 // pred_fallthru
        _
      // Predicated region
      $region73: #{linear_masked_coupling_forward.1} parent=67 // pred_check
        %p1423 = pneg %p331
      $region74: #{linear_masked_coupling_forward.1} parent=67 // pred_check_branch
        %1425 = sbr.rel (%p1423) target = $region76
      $region75: #{linear_masked_coupling_forward.1} parent=67 // pred_region
        %s1426 = smul.u32 4, %s25
      $region76: #{linear_masked_coupling_forward.1} parent=67 // pred_fallthru
        _
    $region68: #{linear_masked_coupling_forward.1} parent=5 // pred_fallthru
      _
    %p1427 = scmp.le.s32.totalorder 2, %s20
    // Predicated region
    $region77: #{linear_masked_coupling_forward.1} parent=5 // pred_check
      %p1428 = pneg %p1427
    $region78: #{linear_masked_coupling_forward.1} parent=5 // pred_check_branch
      %1430 = sbr.rel (%p1428) target = $region80
    $region79: #{linear_masked_coupling_forward.1} parent=5 // pred_region
      %s1431 = ssub.s32 %s20, 2
      // Predicated region
      $region81: #{linear_masked_coupling_forward.1} parent=79 // pred_check
        %p1432 = pneg %p311
      $region82: #{linear_masked_coupling_forward.1} parent=79 // pred_check_branch
        %1434 = sbr.rel (%p1432) target = $region84
      $region83: #{linear_masked_coupling_forward.1} parent=79 // pred_region
        %s1435 = smul.u32 4, %s26
        %p1436 = scmp.lt.s32.totalorder %s1435, 7
        %s1437 = scalar_select %p1436, %s1435, 7
        %s1438 = smul.addr %s1437, 8
        %s1439 = scalar_lea.vmem %s12, %s1438
      $region84: #{linear_masked_coupling_forward.1} parent=79 // pred_fallthru
        _
      // Predicated region
      $region85: #{linear_masked_coupling_forward.1} parent=79 // pred_check
        %p1440 = pneg %p337
      $region86: #{linear_masked_coupling_forward.1} parent=79 // pred_check_branch
        %1442 = sbr.rel (%p1440) target = $region88
      $region87: #{linear_masked_coupling_forward.1} parent=79 // pred_region
        %s1443 = smul.u32 4, %s26
        %p1444 = scmp.lt.s32.totalorder %s1443, 7
        %s1445 = scalar_select %p1444, %s1443, 7
        %s1446 = smul.addr %s1445, 8
        %s1447 = scalar_lea.vmem %s13, %s1446
      $region88: #{linear_masked_coupling_forward.1} parent=79 // pred_fallthru
        _
    $region80: #{linear_masked_coupling_forward.1} parent=5 // pred_fallthru
      _
  $region6: #{linear_masked_coupling_forward.1} parent=0 // loop_footer
    %s24 = sadd.s32 1, %s20
  $region7: #{linear_masked_coupling_forward.1} parent=0 // loop_footer_branch
    %19 = sbr.rel target = $region3
  $region8: #{linear_masked_coupling_forward.1} parent=0 // loop_exit
    _

</llo_original>
